<compile_context>
chip_gen: v6e
topology: v6e:2x2x1
jax: 0.10.0
libtpu: 0.0.40
codegen_flags: <defaults>
</compile_context>

<pallas_src>
import functools

import jax
import jax.numpy as jnp
import numpy as np
from jax import lax
from jax.experimental import pallas as pl
from jax.experimental.pallas import tpu as pltpu


# ----------------------------------------------------------------------------
# Fused kernel: whole batch in one grid-less invocation, batch in sublanes
# ----------------------------------------------------------------------------
def _cnn_lstm_kernel(x1_ref, w1_ref, b1_ref, w2_ref, b2_ref,
                     wihf_ref, whh_ref, bf_ref, wihb_ref, bb_ref,
                     wc1_ref, bc1_ref, wc2_ref, bc2_ref, out_ref,
                     *, B, T, S, C1, C2, H):
    f32 = jnp.float32
    S4 = S // 4
    NF = T * B          # frames per s4-group; also LSTM batch rows (t, b)
    NB = S4 * NF        # rows per s2-parity block

    # ---- conv1 (im2col + row sort done by wrapper) + ReLU -------------------
    a1 = jnp.dot(x1_ref[...], w1_ref[...], preferred_element_type=f32) + b1_ref[...]
    a1 = jnp.maximum(a1, 0.0)                          # (4*NB, C1), rows (q1,q2,s4,t,b)

    # ---- MaxPool1d(2) #1: q1-parity halves are contiguous & aligned ---------
    p1 = jnp.maximum(a1[:2 * NB, :], a1[2 * NB:, :])   # (2*NB, C1), rows (q2,s4,t,b)
    p_e = p1[:NB, :]        # s2 = 2*s4     (even s2), rows (s4, t, b)
    p_o = p1[NB:, :]        # s2 = 2*s4 + 1 (odd s2)

    # ---- conv2 (k=3, pad=1) as shifted-tap accumulate + ReLU ----------------
    # w2 rows are (k, c1); tap k touches the input at spatial offset k-1.
    w2 = w2_ref[...]
    w2_m1 = w2[0:C1, :]
    w2_0 = w2[C1:2 * C1, :]
    w2_p1 = w2[2 * C1:3 * C1, :]
    z = jnp.zeros((NF, C1), f32)
    # aligned 16-row shifts; the concatenated zero block IS the conv padding
    p_o_prev = jnp.concatenate([z, p_o[:NB - NF, :]], axis=0)   # input s2-1 for even rows
    p_e_next = jnp.concatenate([p_e[NF:, :], z], axis=0)        # input s2+1 for odd rows
    a2e = (jnp.dot(p_o_prev, w2_m1, preferred_element_type=f32)
           + jnp.dot(p_e, w2_0, preferred_element_type=f32)
           + jnp.dot(p_o, w2_p1, preferred_element_type=f32) + b2_ref[...])
    a2o = (jnp.dot(p_e, w2_m1, preferred_element_type=f32)
           + jnp.dot(p_o, w2_0, preferred_element_type=f32)
           + jnp.dot(p_e_next, w2_p1, preferred_element_type=f32) + b2_ref[...])

    # ---- MaxPool1d(2) #2: s2-parity blocks are element-wise partners --------
    p2 = jnp.maximum(jnp.maximum(a2e, 0.0), jnp.maximum(a2o, 0.0))  # (NB, C2), rows (s4,t,b)

    # ---- per-frame features: spatial-major flatten (lane = s4*C2 + c) -------
    # The wrapper permuted W_ih rows so this equals PyTorch's channel-major
    # x.view(B, T, -1).
    feats = jnp.concatenate([p2[g * NF:(g + 1) * NF, :] for g in range(S4)],
                            axis=1)                    # (NF, S4*C2), rows (t, b)

    # ---- BiLSTM: only lstm_out[:, -1, :] is consumed -------------------------
    # Forward direction: input projection hoisted out of the recurrence.
    xg = jnp.dot(feats, wihf_ref[...], preferred_element_type=f32) + bf_ref[...]
    whh = whh_ref[...]
    h = jnp.zeros((B, H), f32)
    c = jnp.zeros((B, H), f32)
    for t in range(T):                                 # fully unrolled (T static)
        g = xg[t * B:(t + 1) * B, :] + jnp.dot(h, whh, preferred_element_type=f32)
        sg = jax.nn.sigmoid(g)                         # full 4H-wide EUP pass (f32)
        th = jnp.tanh(g)
        c = sg[:, H:2 * H] * c + sg[:, 0:H] * th[:, 2 * H:3 * H]   # f*c + i*g
        h = sg[:, 3 * H:4 * H] * jnp.tanh(c)                       # o*tanh(c)

    # Backward direction: single cell step from zero state at t = T-1 (exact).
    gb = (jnp.dot(feats[(T - 1) * B:T * B, :], wihb_ref[...],
                  preferred_element_type=f32) + bb_ref[...])
    sgb = jax.nn.sigmoid(gb)
    thb = jnp.tanh(gb)
    h_b = sgb[:, 3 * H:4 * H] * jnp.tanh(sgb[:, 0:H] * thb[:, 2 * H:3 * H])

    # ---- classifier -----------------------------------------------------------
    hc = jnp.concatenate([h, h_b], axis=1)             # (B, 2H)
    z1 = jnp.maximum(jnp.dot(hc, wc1_ref[...], preferred_element_type=f32)
                     + bc1_ref[...], 0.0)
    # TODO(synk): Dropout(0.3) is identity in eval mode; training-mode RNG mask omitted.
    out = jnp.dot(z1, wc2_ref[...], preferred_element_type=f32) + bc2_ref[...]
    out_ref[...] = out.astype(out_ref.dtype)


# ----------------------------------------------------------------------------
# Wrapper: layout plumbing (XLA) + a single grid-less pallas_call
# ----------------------------------------------------------------------------
def cnn_lstm_forward(x, p):
    B, T, C, S = x.shape
    assert S % 4 == 0, "two MaxPool1d(2) stages need spatial length % 4 == 0"
    K1, pad1 = 5, 2
    C1 = p["w_c1"].shape[-1]
    C2 = p["w_c2"].shape[-1]
    S4 = S // 4
    F = C2 * S4
    H = p["w_hh_f"].shape[0]
    nc = p["w_cls2"].shape[1]

    # conv1 im2col in XLA: channels-last frames, spatial zero-pad, K1 shifted
    # slices -> columns ordered (k, c).  Then sort rows as (q1, q2, s4, t, b)
    # with s = 4*s4 + 2*q2 + q1, so both poolings and the feature flatten are
    # contiguous/aligned inside the kernel.
    xt = jnp.pad(jnp.transpose(x, (0, 1, 3, 2)),
                 ((0, 0), (0, 0), (pad1, pad1), (0, 0)))      # (B, T, S+4, C)
    xim = jnp.concatenate([xt[:, :, k:k + S, :] for k in range(K1)],
                          axis=-1)                            # (B, T, S, K1*C)
    x1 = (xim.reshape(B, T, S4, 2, 2, K1 * C)
             .transpose(4, 3, 2, 1, 0, 5)                     # (q1, q2, s4, t, b, col)
             .reshape(4 * S4 * T * B, K1 * C))

    # Weight plumbing (layout only): im2col-flatten conv weights; permute the
    # LSTM input-weight rows from PyTorch's channel-major flatten (c*S4 + s)
    # to the kernel's spatial-major flatten (s*C2 + c) -> identical math.
    w1 = p["w_c1"].reshape(K1 * C, C1)
    w2 = p["w_c2"].reshape(3 * C1, C2)
    j = np.arange(F)
    perm = (j % C2) * S4 + (j // C2)
    wihf = p["w_ih_f"][perm]
    wihb = p["w_ih_b"][perm]

    args = (x1, w1, p["b_c1"], w2, p["b_c2"],
            wihf, p["w_hh_f"], p["b_f"], wihb, p["b_b"],
            p["w_cls1"], p["b_cls1"], p["w_cls2"], p["b_cls2"])

    kernel = functools.partial(_cnn_lstm_kernel, B=B, T=T, S=S,
                               C1=C1, C2=C2, H=H)
    vmem = pl.BlockSpec(memory_space=pltpu.MemorySpace.VMEM)
    return pl.pallas_call(
        kernel,
        out_shape=jax.ShapeDtypeStruct((B, nc), jnp.float32),
        in_specs=[vmem] * len(args),
        out_specs=vmem,
    )(*args)


# ----------------------------------------------------------------------------
# Pure-JAX reference (same math, PyTorch layout conventions) for correctness
# ----------------------------------------------------------------------------
def reference_forward(x, p):
    B, T, C, S = x.shape
    fr = x.reshape(B * T, C, S).transpose(0, 2, 1)

    def conv_block(xx, w, b, pad):
        K = w.shape[0]
        S_ = xx.shape[1]
        xp = jnp.pad(xx, ((0, 0), (pad, pad), (0, 0)))
        acc = sum(jnp.einsum("nsc,co->nso", xp[:, k:k + S_, :], w[k])
                  for k in range(K)) + b
        acc = jnp.maximum(acc, 0.0)
        return jnp.max(acc.reshape(acc.shape[0], S_ // 2, 2, -1), axis=2)

    y = conv_block(fr, p["w_c1"], p["b_c1"], 2)
    y = conv_block(y, p["w_c2"], p["b_c2"], 1)
    feats = y.transpose(0, 2, 1).reshape(B, T, -1)          # channel-major flatten
    H = p["w_hh_f"].shape[0]

    def step(carry, x_t):
        h, c = carry
        g = x_t @ p["w_ih_f"] + h @ p["w_hh_f"] + p["b_f"][0]
        i = jax.nn.sigmoid(g[:, :H]); f = jax.nn.sigmoid(g[:, H:2 * H])
        gg = jnp.tanh(g[:, 2 * H:3 * H]); o = jax.nn.sigmoid(g[:, 3 * H:])
        c = f * c + i * gg
        h = o * jnp.tanh(c)
        return (h, c), None

    (h_f, _), _ = lax.scan(step, (jnp.zeros((B, H)), jnp.zeros((B, H))),
                           feats.transpose(1, 0, 2))
    g = feats[:, -1, :] @ p["w_ih_b"] + p["b_b"][0]
    i = jax.nn.sigmoid(g[:, :H]); gg = jnp.tanh(g[:, 2 * H:3 * H])
    o = jax.nn.sigmoid(g[:, 3 * H:])
    h_b = o * jnp.tanh(i * gg)
    hcat = jnp.concatenate([h_f, h_b], -1)
    z = jnp.maximum(hcat @ p["w_cls1"] + p["b_cls1"][0], 0.0)
    return z @ p["w_cls2"] + p["b_cls2"][0]


# ----------------------------------------------------------------------------
def init_params(key, C, S, H, num_classes):
    F = 32 * (S // 4)

    def u(k, shape, fan_in):
        s = 1.0 / np.sqrt(fan_in)
        return jax.random.uniform(k, shape, jnp.float32, -s, s)

    ks = jax.random.split(key, 14)
    return {
        # conv weights stored as (K, C_in, C_out)
        "w_c1": u(ks[0], (5, C, 16), C * 5),
        "b_c1": u(ks[1], (1, 16), C * 5),
        "w_c2": u(ks[2], (3, 16, 32), 16 * 3),
        "b_c2": u(ks[3], (1, 32), 16 * 3),
        # LSTM (gate order i, f, g, o); biases are b_ih + b_hh folded together
        "w_ih_f": u(ks[4], (F, 4 * H), H),
        "w_hh_f": u(ks[5], (H, 4 * H), H),
        "b_f": u(ks[6], (1, 4 * H), H),
        "w_ih_b": u(ks[7], (F, 4 * H), H),
        "b_b": u(ks[8], (1, 4 * H), H),
        # classifier
        "w_cls1": u(ks[9], (2 * H, 64), 2 * H),
        "b_cls1": u(ks[10], (1, 64), 2 * H),
        "w_cls2": u(ks[11], (64, num_classes), 64),
        "b_cls2": u(ks[12], (1, num_classes), 64),
    }


if __name__ == "__main__":
    B, T, C, S = 2, 8, 4, 16
    H, num_classes = 32, 2

    key = jax.random.PRNGKey(0)
    kx, kp = jax.random.split(key)
    x = jax.random.normal(kx, (B, T, C, S), jnp.float32)
    params = init_params(kp, C, S, H, num_classes)

    fwd = jax.jit(cnn_lstm_forward)
    out = jax.block_until_ready(fwd(x, params))

    ref = jax.block_until_ready(reference_forward(x, params))
    np.testing.assert_allclose(np.asarray(out), np.asarray(ref),
                               rtol=1e-4, atol=1e-5)
    assert out.shape == (B, num_classes)
    print("KERNEL_OK")
</pallas_src>

<mosaic_0001>
module attributes {stable_mosaic.version = 11 : i64} {
  func.func @_cnn_lstm_kernel(%arg0: memref<256x20xf32, #tpu.memory_space<vmem>>, %arg1: memref<20x16xf32, #tpu.memory_space<vmem>>, %arg2: memref<1x16xf32, #tpu.memory_space<vmem>>, %arg3: memref<48x32xf32, #tpu.memory_space<vmem>>, %arg4: memref<1x32xf32, #tpu.memory_space<vmem>>, %arg5: memref<128x128xf32, #tpu.memory_space<vmem>>, %arg6: memref<32x128xf32, #tpu.memory_space<vmem>>, %arg7: memref<1x128xf32, #tpu.memory_space<vmem>>, %arg8: memref<128x128xf32, #tpu.memory_space<vmem>>, %arg9: memref<1x128xf32, #tpu.memory_space<vmem>>, %arg10: memref<64x64xf32, #tpu.memory_space<vmem>>, %arg11: memref<1x64xf32, #tpu.memory_space<vmem>>, %arg12: memref<64x2xf32, #tpu.memory_space<vmem>>, %arg13: memref<1x2xf32, #tpu.memory_space<vmem>>, %arg14: memref<2x2xf32, #tpu.memory_space<vmem>>) attributes {dimension_semantics = [], scalar_prefetch = 0 : i64, scratch_operands = 0 : i64, tpu.core_type = #tpu.core_type<tc>} {
    %c0 = arith.constant 0 : index
    %c0_0 = arith.constant 0 : index
    %0 = vector.load %arg0[%c0, %c0_0] : memref<256x20xf32, #tpu.memory_space<vmem>>, vector<256x20xf32>
    %c0_1 = arith.constant 0 : index
    %c0_2 = arith.constant 0 : index
    %1 = vector.load %arg1[%c0_1, %c0_2] : memref<20x16xf32, #tpu.memory_space<vmem>>, vector<20x16xf32>
    %cst = arith.constant dense<0.000000e+00> : vector<256x16xf32>
    %2 = tpu.matmul %0, %1, %cst {dimension_numbers = #tpu.dot_dimension_numbers<[1], [0], [0], [1], [0, 0, 1, 1], [], []>} : vector<256x20xf32>, vector<20x16xf32>, vector<256x16xf32> -> vector<256x16xf32>
    %c0_3 = arith.constant 0 : index
    %c0_4 = arith.constant 0 : index
    %3 = vector.load %arg2[%c0_3, %c0_4] : memref<1x16xf32, #tpu.memory_space<vmem>>, vector<1x16xf32>
    %4 = vector.broadcast %3 : vector<1x16xf32> to vector<256x16xf32>
    %5 = arith.addf %2, %4 : vector<256x16xf32>
    %cst_5 = arith.constant 0.000000e+00 : f32
    %6 = vector.broadcast %cst_5 : f32 to vector<256x16xf32>
    %7 = arith.maximumf %5, %6 : vector<256x16xf32>
    %8 = vector.extract_strided_slice %7 {offsets = [0, 0], sizes = [128, 16], strides = [1, 1]} : vector<256x16xf32> to vector<128x16xf32>
    %9 = vector.extract_strided_slice %7 {offsets = [128, 0], sizes = [128, 16], strides = [1, 1]} : vector<256x16xf32> to vector<128x16xf32>
    %10 = arith.maximumf %8, %9 : vector<128x16xf32>
    %11 = vector.extract_strided_slice %10 {offsets = [0, 0], sizes = [64, 16], strides = [1, 1]} : vector<128x16xf32> to vector<64x16xf32>
    %12 = vector.extract_strided_slice %10 {offsets = [64, 0], sizes = [64, 16], strides = [1, 1]} : vector<128x16xf32> to vector<64x16xf32>
    %c0_6 = arith.constant 0 : index
    %c0_7 = arith.constant 0 : index
    %13 = vector.load %arg3[%c0_6, %c0_7] : memref<48x32xf32, #tpu.memory_space<vmem>>, vector<48x32xf32>
    %14 = vector.extract_strided_slice %13 {offsets = [0, 0], sizes = [16, 32], strides = [1, 1]} : vector<48x32xf32> to vector<16x32xf32>
    %15 = vector.extract_strided_slice %13 {offsets = [16, 0], sizes = [16, 32], strides = [1, 1]} : vector<48x32xf32> to vector<16x32xf32>
    %16 = vector.extract_strided_slice %13 {offsets = [32, 0], sizes = [16, 32], strides = [1, 1]} : vector<48x32xf32> to vector<16x32xf32>
    %cst_8 = arith.constant 0.000000e+00 : f32
    %17 = vector.broadcast %cst_8 : f32 to vector<16x16xf32>
    %18 = vector.extract_strided_slice %12 {offsets = [0, 0], sizes = [48, 16], strides = [1, 1]} : vector<64x16xf32> to vector<48x16xf32>
    %19 = tpu.concatenate %17, %18 in 0 : vector<16x16xf32>, vector<48x16xf32> -> vector<64x16xf32>
    %20 = vector.extract_strided_slice %11 {offsets = [16, 0], sizes = [48, 16], strides = [1, 1]} : vector<64x16xf32> to vector<48x16xf32>
    %21 = tpu.concatenate %20, %17 in 0 : vector<48x16xf32>, vector<16x16xf32> -> vector<64x16xf32>
    %cst_9 = arith.constant dense<0.000000e+00> : vector<64x32xf32>
    %22 = tpu.matmul %19, %14, %cst_9 {dimension_numbers = #tpu.dot_dimension_numbers<[1], [0], [0], [1], [0, 0, 1, 1], [], []>} : vector<64x16xf32>, vector<16x32xf32>, vector<64x32xf32> -> vector<64x32xf32>
    %cst_10 = arith.constant dense<0.000000e+00> : vector<64x32xf32>
    %23 = tpu.matmul %11, %15, %cst_10 {dimension_numbers = #tpu.dot_dimension_numbers<[1], [0], [0], [1], [0, 0, 1, 1], [], []>} : vector<64x16xf32>, vector<16x32xf32>, vector<64x32xf32> -> vector<64x32xf32>
    %24 = arith.addf %22, %23 : vector<64x32xf32>
    %cst_11 = arith.constant dense<0.000000e+00> : vector<64x32xf32>
    %25 = tpu.matmul %12, %16, %cst_11 {dimension_numbers = #tpu.dot_dimension_numbers<[1], [0], [0], [1], [0, 0, 1, 1], [], []>} : vector<64x16xf32>, vector<16x32xf32>, vector<64x32xf32> -> vector<64x32xf32>
    %26 = arith.addf %24, %25 : vector<64x32xf32>
    %c0_12 = arith.constant 0 : index
    %c0_13 = arith.constant 0 : index
    %27 = vector.load %arg4[%c0_12, %c0_13] : memref<1x32xf32, #tpu.memory_space<vmem>>, vector<1x32xf32>
    %28 = vector.broadcast %27 : vector<1x32xf32> to vector<64x32xf32>
    %29 = arith.addf %26, %28 : vector<64x32xf32>
    %cst_14 = arith.constant dense<0.000000e+00> : vector<64x32xf32>
    %30 = tpu.matmul %11, %14, %cst_14 {dimension_numbers = #tpu.dot_dimension_numbers<[1], [0], [0], [1], [0, 0, 1, 1], [], []>} : vector<64x16xf32>, vector<16x32xf32>, vector<64x32xf32> -> vector<64x32xf32>
    %cst_15 = arith.constant dense<0.000000e+00> : vector<64x32xf32>
    %31 = tpu.matmul %12, %15, %cst_15 {dimension_numbers = #tpu.dot_dimension_numbers<[1], [0], [0], [1], [0, 0, 1, 1], [], []>} : vector<64x16xf32>, vector<16x32xf32>, vector<64x32xf32> -> vector<64x32xf32>
    %32 = arith.addf %30, %31 : vector<64x32xf32>
    %cst_16 = arith.constant dense<0.000000e+00> : vector<64x32xf32>
    %33 = tpu.matmul %21, %16, %cst_16 {dimension_numbers = #tpu.dot_dimension_numbers<[1], [0], [0], [1], [0, 0, 1, 1], [], []>} : vector<64x16xf32>, vector<16x32xf32>, vector<64x32xf32> -> vector<64x32xf32>
    %34 = arith.addf %32, %33 : vector<64x32xf32>
    %c0_17 = arith.constant 0 : index
    %c0_18 = arith.constant 0 : index
    %35 = vector.load %arg4[%c0_17, %c0_18] : memref<1x32xf32, #tpu.memory_space<vmem>>, vector<1x32xf32>
    %36 = vector.broadcast %35 : vector<1x32xf32> to vector<64x32xf32>
    %37 = arith.addf %34, %36 : vector<64x32xf32>
    %cst_19 = arith.constant 0.000000e+00 : f32
    %38 = vector.broadcast %cst_19 : f32 to vector<64x32xf32>
    %39 = arith.maximumf %29, %38 : vector<64x32xf32>
    %cst_20 = arith.constant 0.000000e+00 : f32
    %40 = vector.broadcast %cst_20 : f32 to vector<64x32xf32>
    %41 = arith.maximumf %37, %40 : vector<64x32xf32>
    %42 = arith.maximumf %39, %41 : vector<64x32xf32>
    %43 = vector.extract_strided_slice %42 {offsets = [0, 0], sizes = [16, 32], strides = [1, 1]} : vector<64x32xf32> to vector<16x32xf32>
    %44 = vector.extract_strided_slice %42 {offsets = [16, 0], sizes = [16, 32], strides = [1, 1]} : vector<64x32xf32> to vector<16x32xf32>
    %45 = vector.extract_strided_slice %42 {offsets = [32, 0], sizes = [16, 32], strides = [1, 1]} : vector<64x32xf32> to vector<16x32xf32>
    %46 = vector.extract_strided_slice %42 {offsets = [48, 0], sizes = [16, 32], strides = [1, 1]} : vector<64x32xf32> to vector<16x32xf32>
    %47 = tpu.concatenate %43, %44, %45, %46 in 1 : vector<16x32xf32>, vector<16x32xf32>, vector<16x32xf32>, vector<16x32xf32> -> vector<16x128xf32>
    %c0_21 = arith.constant 0 : index
    %c0_22 = arith.constant 0 : index
    %48 = vector.load %arg5[%c0_21, %c0_22] : memref<128x128xf32, #tpu.memory_space<vmem>>, vector<128x128xf32>
    %cst_23 = arith.constant dense<0.000000e+00> : vector<16x128xf32>
    %49 = tpu.matmul %47, %48, %cst_23 {dimension_numbers = #tpu.dot_dimension_numbers<[1], [0], [0], [1], [0, 0, 1, 1], [], []>} : vector<16x128xf32>, vector<128x128xf32>, vector<16x128xf32> -> vector<16x128xf32>
    %c0_24 = arith.constant 0 : index
    %c0_25 = arith.constant 0 : index
    %50 = vector.load %arg7[%c0_24, %c0_25] : memref<1x128xf32, #tpu.memory_space<vmem>>, vector<1x128xf32>
    %51 = vector.broadcast %50 : vector<1x128xf32> to vector<16x128xf32>
    %52 = arith.addf %49, %51 : vector<16x128xf32>
    %c0_26 = arith.constant 0 : index
    %c0_27 = arith.constant 0 : index
    %53 = vector.load %arg6[%c0_26, %c0_27] : memref<32x128xf32, #tpu.memory_space<vmem>>, vector<32x128xf32>
    %cst_28 = arith.constant 0.000000e+00 : f32
    %54 = vector.broadcast %cst_28 : f32 to vector<2x32xf32>
    %cst_29 = arith.constant 0.000000e+00 : f32
    %55 = vector.broadcast %cst_29 : f32 to vector<2x32xf32>
    %56 = vector.extract_strided_slice %52 {offsets = [0, 0], sizes = [2, 128], strides = [1, 1]} : vector<16x128xf32> to vector<2x128xf32>
    %cst_30 = arith.constant dense<0.000000e+00> : vector<2x128xf32>
    %57 = tpu.matmul %54, %53, %cst_30 {dimension_numbers = #tpu.dot_dimension_numbers<[1], [0], [0], [1], [0, 0, 1, 1], [], []>} : vector<2x32xf32>, vector<32x128xf32>, vector<2x128xf32> -> vector<2x128xf32>
    %58 = arith.addf %56, %57 : vector<2x128xf32>
    %59 = arith.negf %58 : vector<2x128xf32>
    %60 = math.exp %59 : vector<2x128xf32>
    %cst_31 = arith.constant 1.000000e+00 : f32
    %61 = vector.broadcast %cst_31 : f32 to vector<2x128xf32>
    %62 = arith.addf %61, %60 : vector<2x128xf32>
    %63 = arith.divf %61, %62 : vector<2x128xf32>
    %64 = math.tanh %58 : vector<2x128xf32>
    %65 = vector.extract_strided_slice %63 {offsets = [0, 32], sizes = [2, 32], strides = [1, 1]} : vector<2x128xf32> to vector<2x32xf32>
    %66 = arith.mulf %65, %55 : vector<2x32xf32>
    %67 = vector.extract_strided_slice %63 {offsets = [0, 0], sizes = [2, 32], strides = [1, 1]} : vector<2x128xf32> to vector<2x32xf32>
    %68 = vector.extract_strided_slice %64 {offsets = [0, 64], sizes = [2, 32], strides = [1, 1]} : vector<2x128xf32> to vector<2x32xf32>
    %69 = arith.mulf %67, %68 : vector<2x32xf32>
    %70 = arith.addf %66, %69 : vector<2x32xf32>
    %71 = vector.extract_strided_slice %63 {offsets = [0, 96], sizes = [2, 32], strides = [1, 1]} : vector<2x128xf32> to vector<2x32xf32>
    %72 = math.tanh %70 : vector<2x32xf32>
    %73 = arith.mulf %71, %72 : vector<2x32xf32>
    %74 = vector.extract_strided_slice %52 {offsets = [2, 0], sizes = [2, 128], strides = [1, 1]} : vector<16x128xf32> to vector<2x128xf32>
    %cst_32 = arith.constant dense<0.000000e+00> : vector<2x128xf32>
    %75 = tpu.matmul %73, %53, %cst_32 {dimension_numbers = #tpu.dot_dimension_numbers<[1], [0], [0], [1], [0, 0, 1, 1], [], []>} : vector<2x32xf32>, vector<32x128xf32>, vector<2x128xf32> -> vector<2x128xf32>
    %76 = arith.addf %74, %75 : vector<2x128xf32>
    %77 = arith.negf %76 : vector<2x128xf32>
    %78 = math.exp %77 : vector<2x128xf32>
    %cst_33 = arith.constant 1.000000e+00 : f32
    %79 = vector.broadcast %cst_33 : f32 to vector<2x128xf32>
    %80 = arith.addf %79, %78 : vector<2x128xf32>
    %81 = arith.divf %79, %80 : vector<2x128xf32>
    %82 = math.tanh %76 : vector<2x128xf32>
    %83 = vector.extract_strided_slice %81 {offsets = [0, 32], sizes = [2, 32], strides = [1, 1]} : vector<2x128xf32> to vector<2x32xf32>
    %84 = arith.mulf %83, %70 : vector<2x32xf32>
    %85 = vector.extract_strided_slice %81 {offsets = [0, 0], sizes = [2, 32], strides = [1, 1]} : vector<2x128xf32> to vector<2x32xf32>
    %86 = vector.extract_strided_slice %82 {offsets = [0, 64], sizes = [2, 32], strides = [1, 1]} : vector<2x128xf32> to vector<2x32xf32>
    %87 = arith.mulf %85, %86 : vector<2x32xf32>
    %88 = arith.addf %84, %87 : vector<2x32xf32>
    %89 = vector.extract_strided_slice %81 {offsets = [0, 96], sizes = [2, 32], strides = [1, 1]} : vector<2x128xf32> to vector<2x32xf32>
    %90 = math.tanh %88 : vector<2x32xf32>
    %91 = arith.mulf %89, %90 : vector<2x32xf32>
    %92 = vector.extract_strided_slice %52 {offsets = [4, 0], sizes = [2, 128], strides = [1, 1]} : vector<16x128xf32> to vector<2x128xf32>
    %cst_34 = arith.constant dense<0.000000e+00> : vector<2x128xf32>
    %93 = tpu.matmul %91, %53, %cst_34 {dimension_numbers = #tpu.dot_dimension_numbers<[1], [0], [0], [1], [0, 0, 1, 1], [], []>} : vector<2x32xf32>, vector<32x128xf32>, vector<2x128xf32> -> vector<2x128xf32>
    %94 = arith.addf %92, %93 : vector<2x128xf32>
    %95 = arith.negf %94 : vector<2x128xf32>
    %96 = math.exp %95 : vector<2x128xf32>
    %cst_35 = arith.constant 1.000000e+00 : f32
    %97 = vector.broadcast %cst_35 : f32 to vector<2x128xf32>
    %98 = arith.addf %97, %96 : vector<2x128xf32>
    %99 = arith.divf %97, %98 : vector<2x128xf32>
    %100 = math.tanh %94 : vector<2x128xf32>
    %101 = vector.extract_strided_slice %99 {offsets = [0, 32], sizes = [2, 32], strides = [1, 1]} : vector<2x128xf32> to vector<2x32xf32>
    %102 = arith.mulf %101, %88 : vector<2x32xf32>
    %103 = vector.extract_strided_slice %99 {offsets = [0, 0], sizes = [2, 32], strides = [1, 1]} : vector<2x128xf32> to vector<2x32xf32>
    %104 = vector.extract_strided_slice %100 {offsets = [0, 64], sizes = [2, 32], strides = [1, 1]} : vector<2x128xf32> to vector<2x32xf32>
    %105 = arith.mulf %103, %104 : vector<2x32xf32>
    %106 = arith.addf %102, %105 : vector<2x32xf32>
    %107 = vector.extract_strided_slice %99 {offsets = [0, 96], sizes = [2, 32], strides = [1, 1]} : vector<2x128xf32> to vector<2x32xf32>
    %108 = math.tanh %106 : vector<2x32xf32>
    %109 = arith.mulf %107, %108 : vector<2x32xf32>
    %110 = vector.extract_strided_slice %52 {offsets = [6, 0], sizes = [2, 128], strides = [1, 1]} : vector<16x128xf32> to vector<2x128xf32>
    %cst_36 = arith.constant dense<0.000000e+00> : vector<2x128xf32>
    %111 = tpu.matmul %109, %53, %cst_36 {dimension_numbers = #tpu.dot_dimension_numbers<[1], [0], [0], [1], [0, 0, 1, 1], [], []>} : vector<2x32xf32>, vector<32x128xf32>, vector<2x128xf32> -> vector<2x128xf32>
    %112 = arith.addf %110, %111 : vector<2x128xf32>
    %113 = arith.negf %112 : vector<2x128xf32>
    %114 = math.exp %113 : vector<2x128xf32>
    %cst_37 = arith.constant 1.000000e+00 : f32
    %115 = vector.broadcast %cst_37 : f32 to vector<2x128xf32>
    %116 = arith.addf %115, %114 : vector<2x128xf32>
    %117 = arith.divf %115, %116 : vector<2x128xf32>
    %118 = math.tanh %112 : vector<2x128xf32>
    %119 = vector.extract_strided_slice %117 {offsets = [0, 32], sizes = [2, 32], strides = [1, 1]} : vector<2x128xf32> to vector<2x32xf32>
    %120 = arith.mulf %119, %106 : vector<2x32xf32>
    %121 = vector.extract_strided_slice %117 {offsets = [0, 0], sizes = [2, 32], strides = [1, 1]} : vector<2x128xf32> to vector<2x32xf32>
    %122 = vector.extract_strided_slice %118 {offsets = [0, 64], sizes = [2, 32], strides = [1, 1]} : vector<2x128xf32> to vector<2x32xf32>
    %123 = arith.mulf %121, %122 : vector<2x32xf32>
    %124 = arith.addf %120, %123 : vector<2x32xf32>
    %125 = vector.extract_strided_slice %117 {offsets = [0, 96], sizes = [2, 32], strides = [1, 1]} : vector<2x128xf32> to vector<2x32xf32>
    %126 = math.tanh %124 : vector<2x32xf32>
    %127 = arith.mulf %125, %126 : vector<2x32xf32>
    %128 = vector.extract_strided_slice %52 {offsets = [8, 0], sizes = [2, 128], strides = [1, 1]} : vector<16x128xf32> to vector<2x128xf32>
    %cst_38 = arith.constant dense<0.000000e+00> : vector<2x128xf32>
    %129 = tpu.matmul %127, %53, %cst_38 {dimension_numbers = #tpu.dot_dimension_numbers<[1], [0], [0], [1], [0, 0, 1, 1], [], []>} : vector<2x32xf32>, vector<32x128xf32>, vector<2x128xf32> -> vector<2x128xf32>
    %130 = arith.addf %128, %129 : vector<2x128xf32>
    %131 = arith.negf %130 : vector<2x128xf32>
    %132 = math.exp %131 : vector<2x128xf32>
    %cst_39 = arith.constant 1.000000e+00 : f32
    %133 = vector.broadcast %cst_39 : f32 to vector<2x128xf32>
    %134 = arith.addf %133, %132 : vector<2x128xf32>
    %135 = arith.divf %133, %134 : vector<2x128xf32>
    %136 = math.tanh %130 : vector<2x128xf32>
    %137 = vector.extract_strided_slice %135 {offsets = [0, 32], sizes = [2, 32], strides = [1, 1]} : vector<2x128xf32> to vector<2x32xf32>
    %138 = arith.mulf %137, %124 : vector<2x32xf32>
    %139 = vector.extract_strided_slice %135 {offsets = [0, 0], sizes = [2, 32], strides = [1, 1]} : vector<2x128xf32> to vector<2x32xf32>
    %140 = vector.extract_strided_slice %136 {offsets = [0, 64], sizes = [2, 32], strides = [1, 1]} : vector<2x128xf32> to vector<2x32xf32>
    %141 = arith.mulf %139, %140 : vector<2x32xf32>
    %142 = arith.addf %138, %141 : vector<2x32xf32>
    %143 = vector.extract_strided_slice %135 {offsets = [0, 96], sizes = [2, 32], strides = [1, 1]} : vector<2x128xf32> to vector<2x32xf32>
    %144 = math.tanh %142 : vector<2x32xf32>
    %145 = arith.mulf %143, %144 : vector<2x32xf32>
    %146 = vector.extract_strided_slice %52 {offsets = [10, 0], sizes = [2, 128], strides = [1, 1]} : vector<16x128xf32> to vector<2x128xf32>
    %cst_40 = arith.constant dense<0.000000e+00> : vector<2x128xf32>
    %147 = tpu.matmul %145, %53, %cst_40 {dimension_numbers = #tpu.dot_dimension_numbers<[1], [0], [0], [1], [0, 0, 1, 1], [], []>} : vector<2x32xf32>, vector<32x128xf32>, vector<2x128xf32> -> vector<2x128xf32>
    %148 = arith.addf %146, %147 : vector<2x128xf32>
    %149 = arith.negf %148 : vector<2x128xf32>
    %150 = math.exp %149 : vector<2x128xf32>
    %cst_41 = arith.constant 1.000000e+00 : f32
    %151 = vector.broadcast %cst_41 : f32 to vector<2x128xf32>
    %152 = arith.addf %151, %150 : vector<2x128xf32>
    %153 = arith.divf %151, %152 : vector<2x128xf32>
    %154 = math.tanh %148 : vector<2x128xf32>
    %155 = vector.extract_strided_slice %153 {offsets = [0, 32], sizes = [2, 32], strides = [1, 1]} : vector<2x128xf32> to vector<2x32xf32>
    %156 = arith.mulf %155, %142 : vector<2x32xf32>
    %157 = vector.extract_strided_slice %153 {offsets = [0, 0], sizes = [2, 32], strides = [1, 1]} : vector<2x128xf32> to vector<2x32xf32>
    %158 = vector.extract_strided_slice %154 {offsets = [0, 64], sizes = [2, 32], strides = [1, 1]} : vector<2x128xf32> to vector<2x32xf32>
    %159 = arith.mulf %157, %158 : vector<2x32xf32>
    %160 = arith.addf %156, %159 : vector<2x32xf32>
    %161 = vector.extract_strided_slice %153 {offsets = [0, 96], sizes = [2, 32], strides = [1, 1]} : vector<2x128xf32> to vector<2x32xf32>
    %162 = math.tanh %160 : vector<2x32xf32>
    %163 = arith.mulf %161, %162 : vector<2x32xf32>
    %164 = vector.extract_strided_slice %52 {offsets = [12, 0], sizes = [2, 128], strides = [1, 1]} : vector<16x128xf32> to vector<2x128xf32>
    %cst_42 = arith.constant dense<0.000000e+00> : vector<2x128xf32>
    %165 = tpu.matmul %163, %53, %cst_42 {dimension_numbers = #tpu.dot_dimension_numbers<[1], [0], [0], [1], [0, 0, 1, 1], [], []>} : vector<2x32xf32>, vector<32x128xf32>, vector<2x128xf32> -> vector<2x128xf32>
    %166 = arith.addf %164, %165 : vector<2x128xf32>
    %167 = arith.negf %166 : vector<2x128xf32>
    %168 = math.exp %167 : vector<2x128xf32>
    %cst_43 = arith.constant 1.000000e+00 : f32
    %169 = vector.broadcast %cst_43 : f32 to vector<2x128xf32>
    %170 = arith.addf %169, %168 : vector<2x128xf32>
    %171 = arith.divf %169, %170 : vector<2x128xf32>
    %172 = math.tanh %166 : vector<2x128xf32>
    %173 = vector.extract_strided_slice %171 {offsets = [0, 32], sizes = [2, 32], strides = [1, 1]} : vector<2x128xf32> to vector<2x32xf32>
    %174 = arith.mulf %173, %160 : vector<2x32xf32>
    %175 = vector.extract_strided_slice %171 {offsets = [0, 0], sizes = [2, 32], strides = [1, 1]} : vector<2x128xf32> to vector<2x32xf32>
    %176 = vector.extract_strided_slice %172 {offsets = [0, 64], sizes = [2, 32], strides = [1, 1]} : vector<2x128xf32> to vector<2x32xf32>
    %177 = arith.mulf %175, %176 : vector<2x32xf32>
    %178 = arith.addf %174, %177 : vector<2x32xf32>
    %179 = vector.extract_strided_slice %171 {offsets = [0, 96], sizes = [2, 32], strides = [1, 1]} : vector<2x128xf32> to vector<2x32xf32>
    %180 = math.tanh %178 : vector<2x32xf32>
    %181 = arith.mulf %179, %180 : vector<2x32xf32>
    %182 = vector.extract_strided_slice %52 {offsets = [14, 0], sizes = [2, 128], strides = [1, 1]} : vector<16x128xf32> to vector<2x128xf32>
    %cst_44 = arith.constant dense<0.000000e+00> : vector<2x128xf32>
    %183 = tpu.matmul %181, %53, %cst_44 {dimension_numbers = #tpu.dot_dimension_numbers<[1], [0], [0], [1], [0, 0, 1, 1], [], []>} : vector<2x32xf32>, vector<32x128xf32>, vector<2x128xf32> -> vector<2x128xf32>
    %184 = arith.addf %182, %183 : vector<2x128xf32>
    %185 = arith.negf %184 : vector<2x128xf32>
    %186 = math.exp %185 : vector<2x128xf32>
    %cst_45 = arith.constant 1.000000e+00 : f32
    %187 = vector.broadcast %cst_45 : f32 to vector<2x128xf32>
    %188 = arith.addf %187, %186 : vector<2x128xf32>
    %189 = arith.divf %187, %188 : vector<2x128xf32>
    %190 = math.tanh %184 : vector<2x128xf32>
    %191 = vector.extract_strided_slice %189 {offsets = [0, 32], sizes = [2, 32], strides = [1, 1]} : vector<2x128xf32> to vector<2x32xf32>
    %192 = arith.mulf %191, %178 : vector<2x32xf32>
    %193 = vector.extract_strided_slice %189 {offsets = [0, 0], sizes = [2, 32], strides = [1, 1]} : vector<2x128xf32> to vector<2x32xf32>
    %194 = vector.extract_strided_slice %190 {offsets = [0, 64], sizes = [2, 32], strides = [1, 1]} : vector<2x128xf32> to vector<2x32xf32>
    %195 = arith.mulf %193, %194 : vector<2x32xf32>
    %196 = arith.addf %192, %195 : vector<2x32xf32>
    %197 = vector.extract_strided_slice %189 {offsets = [0, 96], sizes = [2, 32], strides = [1, 1]} : vector<2x128xf32> to vector<2x32xf32>
    %198 = math.tanh %196 : vector<2x32xf32>
    %199 = arith.mulf %197, %198 : vector<2x32xf32>
    %200 = vector.extract_strided_slice %47 {offsets = [14, 0], sizes = [2, 128], strides = [1, 1]} : vector<16x128xf32> to vector<2x128xf32>
    %c0_46 = arith.constant 0 : index
    %c0_47 = arith.constant 0 : index
    %201 = vector.load %arg8[%c0_46, %c0_47] : memref<128x128xf32, #tpu.memory_space<vmem>>, vector<128x128xf32>
    %cst_48 = arith.constant dense<0.000000e+00> : vector<2x128xf32>
    %202 = tpu.matmul %200, %201, %cst_48 {dimension_numbers = #tpu.dot_dimension_numbers<[1], [0], [0], [1], [0, 0, 1, 1], [], []>} : vector<2x128xf32>, vector<128x128xf32>, vector<2x128xf32> -> vector<2x128xf32>
    %c0_49 = arith.constant 0 : index
    %c0_50 = arith.constant 0 : index
    %203 = vector.load %arg9[%c0_49, %c0_50] : memref<1x128xf32, #tpu.memory_space<vmem>>, vector<1x128xf32>
    %204 = vector.broadcast %203 : vector<1x128xf32> to vector<2x128xf32>
    %205 = arith.addf %202, %204 : vector<2x128xf32>
    %206 = arith.negf %205 : vector<2x128xf32>
    %207 = math.exp %206 : vector<2x128xf32>
    %cst_51 = arith.constant 1.000000e+00 : f32
    %208 = vector.broadcast %cst_51 : f32 to vector<2x128xf32>
    %209 = arith.addf %208, %207 : vector<2x128xf32>
    %210 = arith.divf %208, %209 : vector<2x128xf32>
    %211 = math.tanh %205 : vector<2x128xf32>
    %212 = vector.extract_strided_slice %210 {offsets = [0, 96], sizes = [2, 32], strides = [1, 1]} : vector<2x128xf32> to vector<2x32xf32>
    %213 = vector.extract_strided_slice %210 {offsets = [0, 0], sizes = [2, 32], strides = [1, 1]} : vector<2x128xf32> to vector<2x32xf32>
    %214 = vector.extract_strided_slice %211 {offsets = [0, 64], sizes = [2, 32], strides = [1, 1]} : vector<2x128xf32> to vector<2x32xf32>
    %215 = arith.mulf %213, %214 : vector<2x32xf32>
    %216 = math.tanh %215 : vector<2x32xf32>
    %217 = arith.mulf %212, %216 : vector<2x32xf32>
    %218 = tpu.concatenate %199, %217 in 1 : vector<2x32xf32>, vector<2x32xf32> -> vector<2x64xf32>
    %c0_52 = arith.constant 0 : index
    %c0_53 = arith.constant 0 : index
    %219 = vector.load %arg10[%c0_52, %c0_53] : memref<64x64xf32, #tpu.memory_space<vmem>>, vector<64x64xf32>
    %cst_54 = arith.constant dense<0.000000e+00> : vector<2x64xf32>
    %220 = tpu.matmul %218, %219, %cst_54 {dimension_numbers = #tpu.dot_dimension_numbers<[1], [0], [0], [1], [0, 0, 1, 1], [], []>} : vector<2x64xf32>, vector<64x64xf32>, vector<2x64xf32> -> vector<2x64xf32>
    %c0_55 = arith.constant 0 : index
    %c0_56 = arith.constant 0 : index
    %221 = vector.load %arg11[%c0_55, %c0_56] : memref<1x64xf32, #tpu.memory_space<vmem>>, vector<1x64xf32>
    %222 = vector.broadcast %221 : vector<1x64xf32> to vector<2x64xf32>
    %223 = arith.addf %220, %222 : vector<2x64xf32>
    %cst_57 = arith.constant 0.000000e+00 : f32
    %224 = vector.broadcast %cst_57 : f32 to vector<2x64xf32>
    %225 = arith.maximumf %223, %224 : vector<2x64xf32>
    %c0_58 = arith.constant 0 : index
    %c0_59 = arith.constant 0 : index
    %226 = vector.load %arg12[%c0_58, %c0_59] : memref<64x2xf32, #tpu.memory_space<vmem>>, vector<64x2xf32>
    %cst_60 = arith.constant dense<0.000000e+00> : vector<2x2xf32>
    %227 = tpu.matmul %225, %226, %cst_60 {dimension_numbers = #tpu.dot_dimension_numbers<[1], [0], [0], [1], [0, 0, 1, 1], [], []>} : vector<2x64xf32>, vector<64x2xf32>, vector<2x2xf32> -> vector<2x2xf32>
    %c0_61 = arith.constant 0 : index
    %c0_62 = arith.constant 0 : index
    %228 = vector.load %arg13[%c0_61, %c0_62] : memref<1x2xf32, #tpu.memory_space<vmem>>, vector<1x2xf32>
    %229 = vector.broadcast %228 : vector<1x2xf32> to vector<2x2xf32>
    %230 = arith.addf %227, %229 : vector<2x2xf32>
    %c0_63 = arith.constant 0 : index
    %c0_64 = arith.constant 0 : index
    %231 = vector.load %arg14[%c0_63, %c0_64] : memref<2x2xf32, #tpu.memory_space<vmem>>, vector<2x2xf32>
    tpu.vector_store %arg14[%c0_63, %c0_64], %230 {strides = array<i32>} : memref<2x2xf32, #tpu.memory_space<vmem>>, vector<2x2xf32>,
    return
  }
}

</mosaic_0001>

<llo_original>
// kernel: cnn_lstm_forward.1
$region0: #{cnn_lstm_forward.1}
  #allocation0 [shape = 'u32[]', space=smem, size = 0x4, offset = 0x4, fixed_abs, tag = 'smem constant byte address 0x4 - core index']
  #allocation1 [shape = 'u32[144,128]{1,0:T(1,128)}', space=vmem, size = 0x12000, scoped, tag = 'internal scratch']
  %s0 = inlined_call_operand.vmem [shape: f32[256,20], index: 0, kind: input, shape index: {}]
  %s1 = inlined_call_operand.vmem [shape: f32[20,16], index: 1, kind: input, shape index: {}]
  %s2 = inlined_call_operand.vmem [shape: f32[1,16], index: 2, kind: input, shape index: {}]
  %s3 = inlined_call_operand.vmem [shape: f32[48,32], index: 3, kind: input, shape index: {}]
  %s4 = inlined_call_operand.vmem [shape: f32[1,32], index: 4, kind: input, shape index: {}]
  %s5 = inlined_call_operand.vmem [shape: f32[128,128], index: 5, kind: input, shape index: {}]
  %s6 = inlined_call_operand.vmem [shape: f32[32,128], index: 6, kind: input, shape index: {}]
  %s7 = inlined_call_operand.vmem [shape: f32[1,128], index: 7, kind: input, shape index: {}]
  %s8 = inlined_call_operand.vmem [shape: f32[128,128], index: 8, kind: input, shape index: {}]
  %s9 = inlined_call_operand.vmem [shape: f32[1,128], index: 9, kind: input, shape index: {}]
  %s10 = inlined_call_operand.vmem [shape: f32[64,64], index: 10, kind: input, shape index: {}]
  %s11 = inlined_call_operand.vmem [shape: f32[1,64], index: 11, kind: input, shape index: {}]
  %s12 = inlined_call_operand.vmem [shape: f32[64,2], index: 12, kind: input, shape index: {}]
  %s13 = inlined_call_operand.vmem [shape: f32[1,2], index: 13, kind: input, shape index: {}]
  %s14 = inlined_call_operand.hbm [shape: f32[2,2], index: 14, kind: output, shape index: {}]
  %s15 = sld [smem:[#allocation0]]
  $region66: #{cnn_lstm_forward.1} parent=0
    _
  %s17 = ssub.s32 1, %s15
  %s18 = scalar_select 0, %s17, %s15
  $region1: #{cnn_lstm_forward.1} parent=0
    #allocation2 [shape = 'u8[1024]{0}', space=vmem, size = 0x400, scoped, tag = 'output window, operand 0, single buffered']
    #allocation3 [shape = 's32[1]{0}', space=sflag, size = 0x4, scoped, tag = 'scoped memory for cnn_lstm_forward.1']
    %19 = vsyncpa [#allocation3], 0
    // Predicated region
    $region2: #{cnn_lstm_forward.1} parent=1 // pred_check
      _
    $region3: #{cnn_lstm_forward.1} parent=1 // pred_check_branch
      %21 = sbr.rel (0) target = $region5
    $region4: #{cnn_lstm_forward.1} parent=1 // pred_region
      _
    $region5: #{cnn_lstm_forward.1} parent=1 // pred_fallthru
      _
    // Predicated region
    $region6: #{cnn_lstm_forward.1} parent=1 // pred_check
      _
    $region7: #{cnn_lstm_forward.1} parent=1 // pred_check_branch
      %23 = sbr.rel (0) target = $region9
    $region8: #{cnn_lstm_forward.1} parent=1 // pred_region
      _
    $region9: #{cnn_lstm_forward.1} parent=1 // pred_fallthru
      _
    // Predicated region
    $region10: #{cnn_lstm_forward.1} parent=1 // pred_check
      _
    $region11: #{cnn_lstm_forward.1} parent=1 // pred_check_branch
      %25 = sbr.rel (0) target = $region13
    $region12: #{cnn_lstm_forward.1} parent=1 // pred_region
      _
    $region13: #{cnn_lstm_forward.1} parent=1 // pred_fallthru
      _
    // Predicated region
    $region14: #{cnn_lstm_forward.1} parent=1 // pred_check
      _
    $region15: #{cnn_lstm_forward.1} parent=1 // pred_check_branch
      %27 = sbr.rel (0) target = $region17
    $region16: #{cnn_lstm_forward.1} parent=1 // pred_region
      _
    $region17: #{cnn_lstm_forward.1} parent=1 // pred_fallthru
      _
    // Predicated region
    $region18: #{cnn_lstm_forward.1} parent=1 // pred_check
      _
    $region19: #{cnn_lstm_forward.1} parent=1 // pred_check_branch
      %29 = sbr.rel (0) target = $region21
    $region20: #{cnn_lstm_forward.1} parent=1 // pred_region
      _
    $region21: #{cnn_lstm_forward.1} parent=1 // pred_fallthru
      _
    // Predicated region
    $region22: #{cnn_lstm_forward.1} parent=1 // pred_check
      _
    $region23: #{cnn_lstm_forward.1} parent=1 // pred_check_branch
      %31 = sbr.rel (0) target = $region25
    $region24: #{cnn_lstm_forward.1} parent=1 // pred_region
      _
    $region25: #{cnn_lstm_forward.1} parent=1 // pred_fallthru
      _
    // Predicated region
    $region26: #{cnn_lstm_forward.1} parent=1 // pred_check
      _
    $region27: #{cnn_lstm_forward.1} parent=1 // pred_check_branch
      %33 = sbr.rel (0) target = $region29
    $region28: #{cnn_lstm_forward.1} parent=1 // pred_region
      _
    $region29: #{cnn_lstm_forward.1} parent=1 // pred_fallthru
      _
    // Predicated region
    $region30: #{cnn_lstm_forward.1} parent=1 // pred_check
      _
    $region31: #{cnn_lstm_forward.1} parent=1 // pred_check_branch
      %35 = sbr.rel (0) target = $region33
    $region32: #{cnn_lstm_forward.1} parent=1 // pred_region
      _
    $region33: #{cnn_lstm_forward.1} parent=1 // pred_fallthru
      _
    // Predicated region
    $region34: #{cnn_lstm_forward.1} parent=1 // pred_check
      _
    $region35: #{cnn_lstm_forward.1} parent=1 // pred_check_branch
      %37 = sbr.rel (0) target = $region37
    $region36: #{cnn_lstm_forward.1} parent=1 // pred_region
      _
    $region37: #{cnn_lstm_forward.1} parent=1 // pred_fallthru
      _
    // Predicated region
    $region38: #{cnn_lstm_forward.1} parent=1 // pred_check
      _
    $region39: #{cnn_lstm_forward.1} parent=1 // pred_check_branch
      %39 = sbr.rel (0) target = $region41
    $region40: #{cnn_lstm_forward.1} parent=1 // pred_region
      _
    $region41: #{cnn_lstm_forward.1} parent=1 // pred_fallthru
      _
    // Predicated region
    $region42: #{cnn_lstm_forward.1} parent=1 // pred_check
      _
    $region43: #{cnn_lstm_forward.1} parent=1 // pred_check_branch
      %41 = sbr.rel (0) target = $region45
    $region44: #{cnn_lstm_forward.1} parent=1 // pred_region
      _
    $region45: #{cnn_lstm_forward.1} parent=1 // pred_fallthru
      _
    // Predicated region
    $region46: #{cnn_lstm_forward.1} parent=1 // pred_check
      _
    $region47: #{cnn_lstm_forward.1} parent=1 // pred_check_branch
      %43 = sbr.rel (0) target = $region49
    $region48: #{cnn_lstm_forward.1} parent=1 // pred_region
      _
    $region49: #{cnn_lstm_forward.1} parent=1 // pred_fallthru
      _
    // Predicated region
    $region50: #{cnn_lstm_forward.1} parent=1 // pred_check
      _
    $region51: #{cnn_lstm_forward.1} parent=1 // pred_check_branch
      %45 = sbr.rel (0) target = $region53
    $region52: #{cnn_lstm_forward.1} parent=1 // pred_region
      _
    $region53: #{cnn_lstm_forward.1} parent=1 // pred_fallthru
      _
    // Predicated region
    $region54: #{cnn_lstm_forward.1} parent=1 // pred_check
      _
    $region55: #{cnn_lstm_forward.1} parent=1 // pred_check_branch
      %47 = sbr.rel (0) target = $region57
    $region56: #{cnn_lstm_forward.1} parent=1 // pred_region
      _
    $region57: #{cnn_lstm_forward.1} parent=1 // pred_fallthru
      _
    %v48 = vld [vmem:[%s0] sm:$0xff]
    %v49 = vld [vmem:[%s0 + $0x8] sm:$0xff]
    %v50 = vld [vmem:[%s0 + $0x10] sm:$0xff]
    %v51 = vld [vmem:[%s0 + $0x18] sm:$0xff]
    %v52 = vld [vmem:[%s0 + $0x20] sm:$0xff]
    %v53 = vld [vmem:[%s0 + $0x28] sm:$0xff]
    %v54 = vld [vmem:[%s0 + $0x30] sm:$0xff]
    %v55 = vld [vmem:[%s0 + $0x38] sm:$0xff]
    %v56 = vld [vmem:[%s0 + $0x40] sm:$0xff]
    %v57 = vld [vmem:[%s0 + $0x48] sm:$0xff]
    %v58 = vld [vmem:[%s0 + $0x50] sm:$0xff]
    %v59 = vld [vmem:[%s0 + $0x58] sm:$0xff]
    %v60 = vld [vmem:[%s0 + $0x60] sm:$0xff]
    %v61 = vld [vmem:[%s0 + $0x68] sm:$0xff]
    %v62 = vld [vmem:[%s0 + $0x70] sm:$0xff]
    %v63 = vld [vmem:[%s0 + $0x78] sm:$0xff]
    %v64 = vld [vmem:[%s0 + $0x80] sm:$0xff]
    %v65 = vld [vmem:[%s0 + $0x88] sm:$0xff]
    %v66 = vld [vmem:[%s0 + $0x90] sm:$0xff]
    %v67 = vld [vmem:[%s0 + $0x98] sm:$0xff]
    %v68 = vld [vmem:[%s0 + $0xa0] sm:$0xff]
    %v69 = vld [vmem:[%s0 + $0xa8] sm:$0xff]
    %v70 = vld [vmem:[%s0 + $0xb0] sm:$0xff]
    %v71 = vld [vmem:[%s0 + $0xb8] sm:$0xff]
    %v72 = vld [vmem:[%s0 + $0xc0] sm:$0xff]
    %v73 = vld [vmem:[%s0 + $0xc8] sm:$0xff]
    %v74 = vld [vmem:[%s0 + $0xd0] sm:$0xff]
    %v75 = vld [vmem:[%s0 + $0xd8] sm:$0xff]
    %v76 = vld [vmem:[%s0 + $0xe0] sm:$0xff]
    %v77 = vld [vmem:[%s0 + $0xe8] sm:$0xff]
    %v78 = vld [vmem:[%s0 + $0xf0] sm:$0xff]
    %v79 = vld [vmem:[%s0 + $0xf8] sm:$0xff]
    %v80 = vld [vmem:[%s1] sm:$0xff]
    %v81 = vld [vmem:[%s1 + $0x8] sm:$0xff]
    %v82 = vld [vmem:[%s1 + $0x10] sm:$0xf]
    %v83 = vld [vmem:[%s2] sm:$0x1]
    %v85 = vlaneseq
    %v86 = vshrl.u32 %v85, 7
    %v87 = vsub.s32 0, %v86
    %v88 = vrot.slane %v83, %v87
    %vm90 = vcmask 162816
    %v92 = vsel %vm90, %v48, 0
    %v95 = vsel %vm90, %v49, 0
    %v98 = vsel %vm90, %v50, 0
    %v101 = vsel %vm90, %v51, 0
    %v104 = vsel %vm90, %v52, 0
    %v107 = vsel %vm90, %v53, 0
    %v110 = vsel %vm90, %v54, 0
    %v113 = vsel %vm90, %v55, 0
    %v116 = vsel %vm90, %v56, 0
    %v119 = vsel %vm90, %v57, 0
    %v122 = vsel %vm90, %v58, 0
    %v125 = vsel %vm90, %v59, 0
    %v128 = vsel %vm90, %v60, 0
    %v131 = vsel %vm90, %v61, 0
    %v134 = vsel %vm90, %v62, 0
    %v137 = vsel %vm90, %v63, 0
    %v140 = vsel %vm90, %v64, 0
    %v143 = vsel %vm90, %v65, 0
    %v146 = vsel %vm90, %v66, 0
    %v149 = vsel %vm90, %v67, 0
    %v152 = vsel %vm90, %v68, 0
    %v155 = vsel %vm90, %v69, 0
    %v158 = vsel %vm90, %v70, 0
    %v161 = vsel %vm90, %v71, 0
    %v164 = vsel %vm90, %v72, 0
    %v167 = vsel %vm90, %v73, 0
    %v170 = vsel %vm90, %v74, 0
    %v173 = vsel %vm90, %v75, 0
    %v176 = vsel %vm90, %v76, 0
    %v179 = vsel %vm90, %v77, 0
    %v182 = vsel %vm90, %v78, 0
    %v185 = vsel %vm90, %v79, 0
    %vm187 = vcmask 1043456
    %v189 = vsel %vm187, %v82, 0
    %191 = vmatprep.subr.mxu0 0.0
    %192 = vmatpush1.msra.mxu0 0.0
    %193 = vmatprep.subr.mxu0 0.0
    %194 = vmatpush1.msra.mxu0 0.0
    %195 = vmatprep.subr.mxu0 0.0
    %196 = vmatpush1.msra.mxu0 0.0
    %197 = vmatprep.subr.mxu0 0.0
    %198 = vmatpush1.msra.mxu0 0.0
    %199 = vmatprep.subr.mxu0 0.0
    %200 = vmatpush1.msra.mxu0 0.0
    %201 = vmatprep.subr.mxu0 0.0
    %202 = vmatpush1.msra.mxu0 0.0
    %203 = vmatprep.subr.mxu0 0.0
    %204 = vmatpush1.msra.mxu0 0.0
    %205 = vmatprep.subr.mxu0 0.0
    %206 = vmatpush1.msra.mxu0 0.0
    %207 = vmatprep.subr.mxu0 0.0
    %208 = vmatpush1.msra.mxu0 0.0
    %209 = vmatprep.subr.mxu0 0.0
    %210 = vmatpush1.msra.mxu0 0.0
    %211 = vmatprep.subr.mxu0 0.0
    %212 = vmatpush1.msra.mxu0 0.0
    %213 = vmatprep.subr.mxu0 0.0
    %214 = vmatpush1.msra.mxu0 0.0
    %215 = vmatprep.subr.mxu0 0.0
    %216 = vmatpush1.msra.mxu0 0.0
    %217 = vmatprep.subr.mxu0 0.0
    %218 = vmatpush1.msra.mxu0 %v189
    %219 = vmatprep.subr.mxu0 0.0
    %220 = vmatpush1.msra.mxu0 %v81
    %221 = vmatprep.subr.mxu0 0.0
    %222 = vmatpush1.msra.mxu0 %v80
    %223 = vmatprep.subr.mxu0 0.0
    %224 = vmatpush2.msra.mxu0 0.0
    %225 = vmatprep.subr.mxu0 0.0
    %226 = vmatpush2.msra.mxu0 0.0
    %227 = vmatprep.subr.mxu0 0.0
    %228 = vmatpush2.msra.mxu0 0.0
    %229 = vmatprep.subr.mxu0 0.0
    %230 = vmatpush2.msra.mxu0 0.0
    %231 = vmatprep.subr.mxu0 0.0
    %232 = vmatpush2.msra.mxu0 0.0
    %233 = vmatprep.subr.mxu0 0.0
    %234 = vmatpush2.msra.mxu0 0.0
    %235 = vmatprep.subr.mxu0 0.0
    %236 = vmatpush2.msra.mxu0 0.0
    %237 = vmatprep.subr.mxu0 0.0
    %238 = vmatpush2.msra.mxu0 0.0
    %239 = vmatprep.subr.mxu0 0.0
    %240 = vmatpush2.msra.mxu0 0.0
    %241 = vmatprep.subr.mxu0 0.0
    %242 = vmatpush2.msra.mxu0 0.0
    %243 = vmatprep.subr.mxu0 0.0
    %244 = vmatpush2.msra.mxu0 0.0
    %245 = vmatprep.subr.mxu0 0.0
    %246 = vmatpush2.msra.mxu0 0.0
    %247 = vmatprep.subr.mxu0 0.0
    %248 = vmatpush2.msra.mxu0 0.0
    %249 = vmatprep.subr.mxu0 0.0
    %250 = vmatpush2.msra.mxu0 0.0
    %251 = vmatprep.subr.mxu0 0.0
    %252 = vmatpush2.msra.mxu0 0.0
    %253 = vmatprep.subr.mxu0 0.0
    %254 = vmatpush2.msra.mxu0 0.0
    %255 = vmatprep.mubr.f32.mxu0 0.0
    %256 = vmatmul.mubr.f32.gmra.mxu0 %v92
    %v257 = vpop.f32.mrf.mxu0
    %v258 = vadd.f32 %v88, %v257
    %v259 = vpop.f32.mrf.mxu0
    %260 = vmatprep.mubr.f32.mxu0 0.0
    %261 = vmatmul.mubr.f32.gmra.mxu0 %v95
    %v262 = vpop.f32.mrf.mxu0
    %v263 = vadd.f32 %v88, %v262
    %v264 = vpop.f32.mrf.mxu0
    %265 = vmatprep.mubr.f32.mxu0 0.0
    %266 = vmatmul.mubr.f32.gmra.mxu0 %v98
    %v267 = vpop.f32.mrf.mxu0
    %v268 = vadd.f32 %v88, %v267
    %v269 = vpop.f32.mrf.mxu0
    %270 = vmatprep.mubr.f32.mxu0 0.0
    %271 = vmatmul.mubr.f32.gmra.mxu0 %v101
    %v272 = vpop.f32.mrf.mxu0
    %v273 = vadd.f32 %v88, %v272
    %v274 = vpop.f32.mrf.mxu0
    %275 = vmatprep.mubr.f32.mxu0 0.0
    %276 = vmatmul.mubr.f32.gmra.mxu0 %v104
    %v277 = vpop.f32.mrf.mxu0
    %v278 = vadd.f32 %v88, %v277
    %v279 = vpop.f32.mrf.mxu0
    %280 = vmatprep.mubr.f32.mxu0 0.0
    %281 = vmatmul.mubr.f32.gmra.mxu0 %v107
    %v282 = vpop.f32.mrf.mxu0
    %v283 = vadd.f32 %v88, %v282
    %v284 = vpop.f32.mrf.mxu0
    %285 = vmatprep.mubr.f32.mxu0 0.0
    %286 = vmatmul.mubr.f32.gmra.mxu0 %v110
    %v287 = vpop.f32.mrf.mxu0
    %v288 = vadd.f32 %v88, %v287
    %v289 = vpop.f32.mrf.mxu0
    %290 = vmatprep.mubr.f32.mxu0 0.0
    %291 = vmatmul.mubr.f32.gmra.mxu0 %v113
    %v292 = vpop.f32.mrf.mxu0
    %v293 = vadd.f32 %v88, %v292
    %v294 = vpop.f32.mrf.mxu0
    %295 = vmatprep.mubr.f32.mxu0 0.0
    %296 = vmatmul.mubr.f32.gmra.mxu0 %v116
    %v297 = vpop.f32.mrf.mxu0
    %v298 = vadd.f32 %v88, %v297
    %v299 = vpop.f32.mrf.mxu0
    %300 = vmatprep.mubr.f32.mxu0 0.0
    %301 = vmatmul.mubr.f32.gmra.mxu0 %v119
    %v302 = vpop.f32.mrf.mxu0
    %v303 = vadd.f32 %v88, %v302
    %v304 = vpop.f32.mrf.mxu0
    %305 = vmatprep.mubr.f32.mxu0 0.0
    %306 = vmatmul.mubr.f32.gmra.mxu0 %v122
    %v307 = vpop.f32.mrf.mxu0
    %v308 = vadd.f32 %v88, %v307
    %v309 = vpop.f32.mrf.mxu0
    %310 = vmatprep.mubr.f32.mxu0 0.0
    %311 = vmatmul.mubr.f32.gmra.mxu0 %v125
    %v312 = vpop.f32.mrf.mxu0
    %v313 = vadd.f32 %v88, %v312
    %v314 = vpop.f32.mrf.mxu0
    %315 = vmatprep.mubr.f32.mxu0 0.0
    %316 = vmatmul.mubr.f32.gmra.mxu0 %v128
    %v317 = vpop.f32.mrf.mxu0
    %v318 = vadd.f32 %v88, %v317
    %v319 = vpop.f32.mrf.mxu0
    %320 = vmatprep.mubr.f32.mxu0 0.0
    %321 = vmatmul.mubr.f32.gmra.mxu0 %v131
    %v322 = vpop.f32.mrf.mxu0
    %v323 = vadd.f32 %v88, %v322
    %v324 = vpop.f32.mrf.mxu0
    %325 = vmatprep.mubr.f32.mxu0 0.0
    %326 = vmatmul.mubr.f32.gmra.mxu0 %v134
    %v327 = vpop.f32.mrf.mxu0
    %v328 = vadd.f32 %v88, %v327
    %v329 = vpop.f32.mrf.mxu0
    %330 = vmatprep.mubr.f32.mxu0 0.0
    %331 = vmatmul.mubr.f32.gmra.mxu0 %v137
    %v332 = vpop.f32.mrf.mxu0
    %v333 = vadd.f32 %v88, %v332
    %v334 = vpop.f32.mrf.mxu0
    %335 = vmatprep.mubr.f32.mxu0 0.0
    %336 = vmatmul.mubr.f32.gmra.mxu0 %v140
    %v337 = vpop.f32.mrf.mxu0
    %v338 = vadd.f32 %v88, %v337
    %v339 = vpop.f32.mrf.mxu0
    %340 = vmatprep.mubr.f32.mxu0 0.0
    %341 = vmatmul.mubr.f32.gmra.mxu0 %v143
    %v342 = vpop.f32.mrf.mxu0
    %v343 = vadd.f32 %v88, %v342
    %v344 = vpop.f32.mrf.mxu0
    %345 = vmatprep.mubr.f32.mxu0 0.0
    %346 = vmatmul.mubr.f32.gmra.mxu0 %v146
    %v347 = vpop.f32.mrf.mxu0
    %v348 = vadd.f32 %v88, %v347
    %v349 = vpop.f32.mrf.mxu0
    %350 = vmatprep.mubr.f32.mxu0 0.0
    %351 = vmatmul.mubr.f32.gmra.mxu0 %v149
    %v352 = vpop.f32.mrf.mxu0
    %v353 = vadd.f32 %v88, %v352
    %v354 = vpop.f32.mrf.mxu0
    %355 = vmatprep.mubr.f32.mxu0 0.0
    %356 = vmatmul.mubr.f32.gmra.mxu0 %v152
    %v357 = vpop.f32.mrf.mxu0
    %v358 = vadd.f32 %v88, %v357
    %v359 = vpop.f32.mrf.mxu0
    %360 = vmatprep.mubr.f32.mxu0 0.0
    %361 = vmatmul.mubr.f32.gmra.mxu0 %v155
    %v362 = vpop.f32.mrf.mxu0
    %v363 = vadd.f32 %v88, %v362
    %v364 = vpop.f32.mrf.mxu0
    %365 = vmatprep.mubr.f32.mxu0 0.0
    %366 = vmatmul.mubr.f32.gmra.mxu0 %v158
    %v367 = vpop.f32.mrf.mxu0
    %v368 = vadd.f32 %v88, %v367
    %v369 = vpop.f32.mrf.mxu0
    %370 = vmatprep.mubr.f32.mxu0 0.0
    %371 = vmatmul.mubr.f32.gmra.mxu0 %v161
    %v372 = vpop.f32.mrf.mxu0
    %v373 = vadd.f32 %v88, %v372
    %v374 = vpop.f32.mrf.mxu0
    %375 = vmatprep.mubr.f32.mxu0 0.0
    %376 = vmatmul.mubr.f32.gmra.mxu0 %v164
    %v377 = vpop.f32.mrf.mxu0
    %v378 = vadd.f32 %v88, %v377
    %v379 = vpop.f32.mrf.mxu0
    %380 = vmatprep.mubr.f32.mxu0 0.0
    %381 = vmatmul.mubr.f32.gmra.mxu0 %v167
    %v382 = vpop.f32.mrf.mxu0
    %v383 = vadd.f32 %v88, %v382
    %v384 = vpop.f32.mrf.mxu0
    %385 = vmatprep.mubr.f32.mxu0 0.0
    %386 = vmatmul.mubr.f32.gmra.mxu0 %v170
    %v387 = vpop.f32.mrf.mxu0
    %v388 = vadd.f32 %v88, %v387
    %v389 = vpop.f32.mrf.mxu0
    %390 = vmatprep.mubr.f32.mxu0 0.0
    %391 = vmatmul.mubr.f32.gmra.mxu0 %v173
    %v392 = vpop.f32.mrf.mxu0
    %v393 = vadd.f32 %v88, %v392
    %v394 = vpop.f32.mrf.mxu0
    %395 = vmatprep.mubr.f32.mxu0 0.0
    %396 = vmatmul.mubr.f32.gmra.mxu0 %v176
    %v397 = vpop.f32.mrf.mxu0
    %v398 = vadd.f32 %v88, %v397
    %v399 = vpop.f32.mrf.mxu0
    %400 = vmatprep.mubr.f32.mxu0 0.0
    %401 = vmatmul.mubr.f32.gmra.mxu0 %v179
    %v402 = vpop.f32.mrf.mxu0
    %v403 = vadd.f32 %v88, %v402
    %v404 = vpop.f32.mrf.mxu0
    %405 = vmatprep.mubr.f32.mxu0 0.0
    %406 = vmatmul.mubr.f32.gmra.mxu0 %v182
    %v407 = vpop.f32.mrf.mxu0
    %v408 = vadd.f32 %v88, %v407
    %v409 = vpop.f32.mrf.mxu0
    %410 = vmatprep.mubr.f32.mxu0 0.0
    %411 = vmatmul.mubr.f32.gmra.mxu0 %v185
    %v412 = vpop.f32.mrf.mxu0
    %v413 = vadd.f32 %v88, %v412
    %v414 = vpop.f32.mrf.mxu0
    %415 = vdwg.mxu0
    %v416 = vmax.f32 %v258, 0.0
    %v417 = vmax.f32 %v263, 0.0
    %v418 = vmax.f32 %v268, 0.0
    %v419 = vmax.f32 %v273, 0.0
    %v420 = vmax.f32 %v278, 0.0
    %v421 = vmax.f32 %v283, 0.0
    %v422 = vmax.f32 %v288, 0.0
    %v423 = vmax.f32 %v293, 0.0
    %v424 = vmax.f32 %v298, 0.0
    %v425 = vmax.f32 %v303, 0.0
    %v426 = vmax.f32 %v308, 0.0
    %v427 = vmax.f32 %v313, 0.0
    %v428 = vmax.f32 %v318, 0.0
    %v429 = vmax.f32 %v323, 0.0
    %v430 = vmax.f32 %v328, 0.0
    %v431 = vmax.f32 %v333, 0.0
    %v432 = vmax.f32 %v338, 0.0
    %v433 = vmax.f32 %v343, 0.0
    %v434 = vmax.f32 %v348, 0.0
    %v435 = vmax.f32 %v353, 0.0
    %v436 = vmax.f32 %v358, 0.0
    %v437 = vmax.f32 %v363, 0.0
    %v438 = vmax.f32 %v368, 0.0
    %v439 = vmax.f32 %v373, 0.0
    %v440 = vmax.f32 %v378, 0.0
    %v441 = vmax.f32 %v383, 0.0
    %v442 = vmax.f32 %v388, 0.0
    %v443 = vmax.f32 %v393, 0.0
    %v444 = vmax.f32 %v398, 0.0
    %v445 = vmax.f32 %v403, 0.0
    %v446 = vmax.f32 %v408, 0.0
    %v447 = vmax.f32 %v413, 0.0
    %v448 = vmax.f32 %v416, %v432
    %v449 = vmax.f32 %v417, %v433
    %v450 = vmax.f32 %v418, %v434
    %v451 = vmax.f32 %v419, %v435
    %v452 = vmax.f32 %v420, %v436
    %v453 = vmax.f32 %v421, %v437
    %v454 = vmax.f32 %v422, %v438
    %v455 = vmax.f32 %v423, %v439
    %v456 = vmax.f32 %v424, %v440
    %v457 = vmax.f32 %v425, %v441
    %v458 = vmax.f32 %v426, %v442
    %v459 = vmax.f32 %v427, %v443
    %v460 = vmax.f32 %v428, %v444
    %v461 = vmax.f32 %v429, %v445
    %v462 = vmax.f32 %v430, %v446
    %v463 = vmax.f32 %v431, %v447
    %v464 = vld [vmem:[%s3] sm:$0xff]
    %v465 = vld [vmem:[%s3 + $0x8] sm:$0xff]
    %v466 = vld [vmem:[%s3 + $0x10] sm:$0xff]
    %v467 = vld [vmem:[%s3 + $0x18] sm:$0xff]
    %v468 = vld [vmem:[%s3 + $0x20] sm:$0xff]
    %v469 = vld [vmem:[%s3 + $0x28] sm:$0xff]
    %vm470 = vcmask 130048
    %v472 = vsel %vm470, %v448, 0
    %v475 = vsel %vm470, %v449, 0
    %v478 = vsel %vm470, %v450, 0
    %v481 = vsel %vm470, %v451, 0
    %v484 = vsel %vm470, %v452, 0
    %v487 = vsel %vm470, %v453, 0
    %v490 = vsel %vm470, %v454, 0
    %v493 = vsel %vm470, %v455, 0
    %495 = vmatprep.subr.mxu0 0.0
    %496 = vmatpush1.msra.mxu0 0.0
    %497 = vmatprep.subr.mxu0 0.0
    %498 = vmatpush1.msra.mxu0 0.0
    %499 = vmatprep.subr.mxu0 0.0
    %500 = vmatpush1.msra.mxu0 0.0
    %501 = vmatprep.subr.mxu0 0.0
    %502 = vmatpush1.msra.mxu0 0.0
    %503 = vmatprep.subr.mxu0 0.0
    %504 = vmatpush1.msra.mxu0 0.0
    %505 = vmatprep.subr.mxu0 0.0
    %506 = vmatpush1.msra.mxu0 0.0
    %507 = vmatprep.subr.mxu0 0.0
    %508 = vmatpush1.msra.mxu0 0.0
    %509 = vmatprep.subr.mxu0 0.0
    %510 = vmatpush1.msra.mxu0 0.0
    %511 = vmatprep.subr.mxu0 0.0
    %512 = vmatpush1.msra.mxu0 0.0
    %513 = vmatprep.subr.mxu0 0.0
    %514 = vmatpush1.msra.mxu0 0.0
    %515 = vmatprep.subr.mxu0 0.0
    %516 = vmatpush1.msra.mxu0 0.0
    %517 = vmatprep.subr.mxu0 0.0
    %518 = vmatpush1.msra.mxu0 0.0
    %519 = vmatprep.subr.mxu0 0.0
    %520 = vmatpush1.msra.mxu0 0.0
    %521 = vmatprep.subr.mxu0 0.0
    %522 = vmatpush1.msra.mxu0 0.0
    %523 = vmatprep.subr.mxu0 0.0
    %524 = vmatpush1.msra.mxu0 %v467
    %525 = vmatprep.subr.mxu0 0.0
    %526 = vmatpush1.msra.mxu0 %v466
    %527 = vmatprep.subr.mxu0 0.0
    %528 = vmatpush2.msra.mxu0 0.0
    %529 = vmatprep.subr.mxu0 0.0
    %530 = vmatpush2.msra.mxu0 0.0
    %531 = vmatprep.subr.mxu0 0.0
    %532 = vmatpush2.msra.mxu0 0.0
    %533 = vmatprep.subr.mxu0 0.0
    %534 = vmatpush2.msra.mxu0 0.0
    %535 = vmatprep.subr.mxu0 0.0
    %536 = vmatpush2.msra.mxu0 0.0
    %537 = vmatprep.subr.mxu0 0.0
    %538 = vmatpush2.msra.mxu0 0.0
    %539 = vmatprep.subr.mxu0 0.0
    %540 = vmatpush2.msra.mxu0 0.0
    %541 = vmatprep.subr.mxu0 0.0
    %542 = vmatpush2.msra.mxu0 0.0
    %543 = vmatprep.subr.mxu0 0.0
    %544 = vmatpush2.msra.mxu0 0.0
    %545 = vmatprep.subr.mxu0 0.0
    %546 = vmatpush2.msra.mxu0 0.0
    %547 = vmatprep.subr.mxu0 0.0
    %548 = vmatpush2.msra.mxu0 0.0
    %549 = vmatprep.subr.mxu0 0.0
    %550 = vmatpush2.msra.mxu0 0.0
    %551 = vmatprep.subr.mxu0 0.0
    %552 = vmatpush2.msra.mxu0 0.0
    %553 = vmatprep.subr.mxu0 0.0
    %554 = vmatpush2.msra.mxu0 0.0
    %555 = vmatprep.subr.mxu0 0.0
    %556 = vmatpush2.msra.mxu0 0.0
    %557 = vmatprep.subr.mxu0 0.0
    %558 = vmatpush2.msra.mxu0 0.0
    %559 = vmatprep.mubr.f32.mxu0 0.0
    %560 = vmatmul.mubr.f32.gmra.mxu0 %v472
    %v561 = vpop.f32.mrf.mxu0
    %v562 = vadd.f32 0.0, %v561
    %v563 = vpop.f32.mrf.mxu0
    %564 = vmatprep.mubr.f32.mxu0 0.0
    %565 = vmatmul.mubr.f32.gmra.mxu0 %v475
    %v566 = vpop.f32.mrf.mxu0
    %v567 = vadd.f32 0.0, %v566
    %v568 = vpop.f32.mrf.mxu0
    %569 = vmatprep.mubr.f32.mxu0 0.0
    %570 = vmatmul.mubr.f32.gmra.mxu0 %v478
    %v571 = vpop.f32.mrf.mxu0
    %v572 = vadd.f32 0.0, %v571
    %v573 = vpop.f32.mrf.mxu0
    %574 = vmatprep.mubr.f32.mxu0 0.0
    %575 = vmatmul.mubr.f32.gmra.mxu0 %v481
    %v576 = vpop.f32.mrf.mxu0
    %v577 = vadd.f32 0.0, %v576
    %v578 = vpop.f32.mrf.mxu0
    %579 = vmatprep.mubr.f32.mxu0 0.0
    %580 = vmatmul.mubr.f32.gmra.mxu0 %v484
    %v581 = vpop.f32.mrf.mxu0
    %v582 = vadd.f32 0.0, %v581
    %v583 = vpop.f32.mrf.mxu0
    %584 = vmatprep.mubr.f32.mxu0 0.0
    %585 = vmatmul.mubr.f32.gmra.mxu0 %v487
    %v586 = vpop.f32.mrf.mxu0
    %v587 = vadd.f32 0.0, %v586
    %v588 = vpop.f32.mrf.mxu0
    %589 = vmatprep.mubr.f32.mxu0 0.0
    %590 = vmatmul.mubr.f32.gmra.mxu0 %v490
    %v591 = vpop.f32.mrf.mxu0
    %v592 = vadd.f32 0.0, %v591
    %v593 = vpop.f32.mrf.mxu0
    %594 = vmatprep.mubr.f32.mxu0 0.0
    %595 = vmatmul.mubr.f32.gmra.mxu0 %v493
    %v596 = vpop.f32.mrf.mxu0
    %v597 = vadd.f32 0.0, %v596
    %v598 = vpop.f32.mrf.mxu0
    %599 = vdwg.mxu0
    %v601 = vsel %vm470, 0.0, 0
    %v604 = vsel %vm470, %v456, 0
    %v607 = vsel %vm470, %v457, 0
    %v610 = vsel %vm470, %v458, 0
    %v613 = vsel %vm470, %v459, 0
    %v616 = vsel %vm470, %v460, 0
    %v619 = vsel %vm470, %v461, 0
    %621 = vmatprep.subr.mxu0 0.0
    %622 = vmatpush1.msra.mxu0 0.0
    %623 = vmatprep.subr.mxu0 0.0
    %624 = vmatpush1.msra.mxu0 0.0
    %625 = vmatprep.subr.mxu0 0.0
    %626 = vmatpush1.msra.mxu0 0.0
    %627 = vmatprep.subr.mxu0 0.0
    %628 = vmatpush1.msra.mxu0 0.0
    %629 = vmatprep.subr.mxu0 0.0
    %630 = vmatpush1.msra.mxu0 0.0
    %631 = vmatprep.subr.mxu0 0.0
    %632 = vmatpush1.msra.mxu0 0.0
    %633 = vmatprep.subr.mxu0 0.0
    %634 = vmatpush1.msra.mxu0 0.0
    %635 = vmatprep.subr.mxu0 0.0
    %636 = vmatpush1.msra.mxu0 0.0
    %637 = vmatprep.subr.mxu0 0.0
    %638 = vmatpush1.msra.mxu0 0.0
    %639 = vmatprep.subr.mxu0 0.0
    %640 = vmatpush1.msra.mxu0 0.0
    %641 = vmatprep.subr.mxu0 0.0
    %642 = vmatpush1.msra.mxu0 0.0
    %643 = vmatprep.subr.mxu0 0.0
    %644 = vmatpush1.msra.mxu0 0.0
    %645 = vmatprep.subr.mxu0 0.0
    %646 = vmatpush1.msra.mxu0 0.0
    %647 = vmatprep.subr.mxu0 0.0
    %648 = vmatpush1.msra.mxu0 0.0
    %649 = vmatprep.subr.mxu0 0.0
    %650 = vmatpush1.msra.mxu0 %v465
    %651 = vmatprep.subr.mxu0 0.0
    %652 = vmatpush1.msra.mxu0 %v464
    %653 = vmatprep.subr.mxu0 0.0
    %654 = vmatpush2.msra.mxu0 0.0
    %655 = vmatprep.subr.mxu0 0.0
    %656 = vmatpush2.msra.mxu0 0.0
    %657 = vmatprep.subr.mxu0 0.0
    %658 = vmatpush2.msra.mxu0 0.0
    %659 = vmatprep.subr.mxu0 0.0
    %660 = vmatpush2.msra.mxu0 0.0
    %661 = vmatprep.subr.mxu0 0.0
    %662 = vmatpush2.msra.mxu0 0.0
    %663 = vmatprep.subr.mxu0 0.0
    %664 = vmatpush2.msra.mxu0 0.0
    %665 = vmatprep.subr.mxu0 0.0
    %666 = vmatpush2.msra.mxu0 0.0
    %667 = vmatprep.subr.mxu0 0.0
    %668 = vmatpush2.msra.mxu0 0.0
    %669 = vmatprep.subr.mxu0 0.0
    %670 = vmatpush2.msra.mxu0 0.0
    %671 = vmatprep.subr.mxu0 0.0
    %672 = vmatpush2.msra.mxu0 0.0
    %673 = vmatprep.subr.mxu0 0.0
    %674 = vmatpush2.msra.mxu0 0.0
    %675 = vmatprep.subr.mxu0 0.0
    %676 = vmatpush2.msra.mxu0 0.0
    %677 = vmatprep.subr.mxu0 0.0
    %678 = vmatpush2.msra.mxu0 0.0
    %679 = vmatprep.subr.mxu0 0.0
    %680 = vmatpush2.msra.mxu0 0.0
    %681 = vmatprep.subr.mxu0 0.0
    %682 = vmatpush2.msra.mxu0 0.0
    %683 = vmatprep.subr.mxu0 0.0
    %684 = vmatpush2.msra.mxu0 0.0
    %685 = vmatprep.mubr.f32.mxu0 0.0
    %686 = vmatmul.mubr.f32.gmra.mxu0 %v601
    %v687 = vpop.f32.mrf.mxu0
    %v688 = vadd.f32 %v562, %v687
    %v689 = vpop.f32.mrf.mxu0
    %690 = vmatprep.mubr.f32.mxu0 0.0
    %691 = vmatmul.mubr.f32.gmra.mxu0 %v601
    %v692 = vpop.f32.mrf.mxu0
    %v693 = vadd.f32 %v567, %v692
    %v694 = vpop.f32.mrf.mxu0
    %695 = vmatprep.mubr.f32.mxu0 0.0
    %696 = vmatmul.mubr.f32.gmra.mxu0 %v604
    %v697 = vpop.f32.mrf.mxu0
    %v698 = vadd.f32 %v572, %v697
    %v699 = vpop.f32.mrf.mxu0
    %700 = vmatprep.mubr.f32.mxu0 0.0
    %701 = vmatmul.mubr.f32.gmra.mxu0 %v607
    %v702 = vpop.f32.mrf.mxu0
    %v703 = vadd.f32 %v577, %v702
    %v704 = vpop.f32.mrf.mxu0
    %705 = vmatprep.mubr.f32.mxu0 0.0
    %706 = vmatmul.mubr.f32.gmra.mxu0 %v610
    %v707 = vpop.f32.mrf.mxu0
    %v708 = vadd.f32 %v582, %v707
    %v709 = vpop.f32.mrf.mxu0
    %710 = vmatprep.mubr.f32.mxu0 0.0
    %711 = vmatmul.mubr.f32.gmra.mxu0 %v613
    %v712 = vpop.f32.mrf.mxu0
    %v713 = vadd.f32 %v587, %v712
    %v714 = vpop.f32.mrf.mxu0
    %715 = vmatprep.mubr.f32.mxu0 0.0
    %716 = vmatmul.mubr.f32.gmra.mxu0 %v616
    %v717 = vpop.f32.mrf.mxu0
    %v718 = vadd.f32 %v592, %v717
    %v719 = vpop.f32.mrf.mxu0
    %720 = vmatprep.mubr.f32.mxu0 0.0
    %721 = vmatmul.mubr.f32.gmra.mxu0 %v619
    %v722 = vpop.f32.mrf.mxu0
    %v723 = vadd.f32 %v597, %v722
    %v724 = vpop.f32.mrf.mxu0
    %725 = vdwg.mxu0
    %v727 = vsel %vm470, %v462, 0
    %v730 = vsel %vm470, %v463, 0
    %732 = vmatprep.subr.mxu0 0.0
    %733 = vmatpush1.msra.mxu0 0.0
    %734 = vmatprep.subr.mxu0 0.0
    %735 = vmatpush1.msra.mxu0 0.0
    %736 = vmatprep.subr.mxu0 0.0
    %737 = vmatpush1.msra.mxu0 0.0
    %738 = vmatprep.subr.mxu0 0.0
    %739 = vmatpush1.msra.mxu0 0.0
    %740 = vmatprep.subr.mxu0 0.0
    %741 = vmatpush1.msra.mxu0 0.0
    %742 = vmatprep.subr.mxu0 0.0
    %743 = vmatpush1.msra.mxu0 0.0
    %744 = vmatprep.subr.mxu0 0.0
    %745 = vmatpush1.msra.mxu0 0.0
    %746 = vmatprep.subr.mxu0 0.0
    %747 = vmatpush1.msra.mxu0 0.0
    %748 = vmatprep.subr.mxu0 0.0
    %749 = vmatpush1.msra.mxu0 0.0
    %750 = vmatprep.subr.mxu0 0.0
    %751 = vmatpush1.msra.mxu0 0.0
    %752 = vmatprep.subr.mxu0 0.0
    %753 = vmatpush1.msra.mxu0 0.0
    %754 = vmatprep.subr.mxu0 0.0
    %755 = vmatpush1.msra.mxu0 0.0
    %756 = vmatprep.subr.mxu0 0.0
    %757 = vmatpush1.msra.mxu0 0.0
    %758 = vmatprep.subr.mxu0 0.0
    %759 = vmatpush1.msra.mxu0 0.0
    %760 = vmatprep.subr.mxu0 0.0
    %761 = vmatpush1.msra.mxu0 %v469
    %762 = vmatprep.subr.mxu0 0.0
    %763 = vmatpush1.msra.mxu0 %v468
    %764 = vmatprep.subr.mxu0 0.0
    %765 = vmatpush2.msra.mxu0 0.0
    %766 = vmatprep.subr.mxu0 0.0
    %767 = vmatpush2.msra.mxu0 0.0
    %768 = vmatprep.subr.mxu0 0.0
    %769 = vmatpush2.msra.mxu0 0.0
    %770 = vmatprep.subr.mxu0 0.0
    %771 = vmatpush2.msra.mxu0 0.0
    %772 = vmatprep.subr.mxu0 0.0
    %773 = vmatpush2.msra.mxu0 0.0
    %774 = vmatprep.subr.mxu0 0.0
    %775 = vmatpush2.msra.mxu0 0.0
    %776 = vmatprep.subr.mxu0 0.0
    %777 = vmatpush2.msra.mxu0 0.0
    %778 = vmatprep.subr.mxu0 0.0
    %779 = vmatpush2.msra.mxu0 0.0
    %780 = vmatprep.subr.mxu0 0.0
    %781 = vmatpush2.msra.mxu0 0.0
    %782 = vmatprep.subr.mxu0 0.0
    %783 = vmatpush2.msra.mxu0 0.0
    %784 = vmatprep.subr.mxu0 0.0
    %785 = vmatpush2.msra.mxu0 0.0
    %786 = vmatprep.subr.mxu0 0.0
    %787 = vmatpush2.msra.mxu0 0.0
    %788 = vmatprep.subr.mxu0 0.0
    %789 = vmatpush2.msra.mxu0 0.0
    %790 = vmatprep.subr.mxu0 0.0
    %791 = vmatpush2.msra.mxu0 0.0
    %792 = vmatprep.subr.mxu0 0.0
    %793 = vmatpush2.msra.mxu0 0.0
    %794 = vmatprep.subr.mxu0 0.0
    %795 = vmatpush2.msra.mxu0 0.0
    %796 = vmatprep.mubr.f32.mxu0 0.0
    %797 = vmatmul.mubr.f32.gmra.mxu0 %v604
    %v798 = vpop.f32.mrf.mxu0
    %v799 = vadd.f32 0.0, %v798
    %v800 = vpop.f32.mrf.mxu0
    %801 = vmatprep.mubr.f32.mxu0 0.0
    %802 = vmatmul.mubr.f32.gmra.mxu0 %v607
    %v803 = vpop.f32.mrf.mxu0
    %v804 = vadd.f32 0.0, %v803
    %v805 = vpop.f32.mrf.mxu0
    %806 = vmatprep.mubr.f32.mxu0 0.0
    %807 = vmatmul.mubr.f32.gmra.mxu0 %v610
    %v808 = vpop.f32.mrf.mxu0
    %v809 = vadd.f32 0.0, %v808
    %v810 = vpop.f32.mrf.mxu0
    %811 = vmatprep.mubr.f32.mxu0 0.0
    %812 = vmatmul.mubr.f32.gmra.mxu0 %v613
    %v813 = vpop.f32.mrf.mxu0
    %v814 = vadd.f32 0.0, %v813
    %v815 = vpop.f32.mrf.mxu0
    %816 = vmatprep.mubr.f32.mxu0 0.0
    %817 = vmatmul.mubr.f32.gmra.mxu0 %v616
    %v818 = vpop.f32.mrf.mxu0
    %v819 = vadd.f32 0.0, %v818
    %v820 = vpop.f32.mrf.mxu0
    %821 = vmatprep.mubr.f32.mxu0 0.0
    %822 = vmatmul.mubr.f32.gmra.mxu0 %v619
    %v823 = vpop.f32.mrf.mxu0
    %v824 = vadd.f32 0.0, %v823
    %v825 = vpop.f32.mrf.mxu0
    %826 = vmatprep.mubr.f32.mxu0 0.0
    %827 = vmatmul.mubr.f32.gmra.mxu0 %v727
    %v828 = vpop.f32.mrf.mxu0
    %v829 = vadd.f32 0.0, %v828
    %v830 = vpop.f32.mrf.mxu0
    %831 = vmatprep.mubr.f32.mxu0 0.0
    %832 = vmatmul.mubr.f32.gmra.mxu0 %v730
    %v833 = vpop.f32.mrf.mxu0
    %v834 = vadd.f32 0.0, %v833
    %v835 = vpop.f32.mrf.mxu0
    %836 = vdwg.mxu0
    %v837 = vadd.f32 %v688, %v799
    %v838 = vadd.f32 %v693, %v804
    %v839 = vadd.f32 %v698, %v809
    %v840 = vadd.f32 %v703, %v814
    %v841 = vadd.f32 %v708, %v819
    %v842 = vadd.f32 %v713, %v824
    %v843 = vadd.f32 %v718, %v829
    %v844 = vadd.f32 %v723, %v834
    %v845 = vld [vmem:[%s4] sm:$0x1]
    %v847 = vlaneseq
    %v848 = vshrl.u32 %v847, 7
    %v849 = vsub.s32 0, %v848
    %v850 = vrot.slane %v845, %v849
    %v852 = vadd.f32 %v837, %v850
    %v853 = vadd.f32 %v838, %v850
    %v854 = vadd.f32 %v839, %v850
    %v855 = vadd.f32 %v840, %v850
    %v856 = vadd.f32 %v841, %v850
    %v857 = vadd.f32 %v842, %v850
    %v858 = vadd.f32 %v843, %v850
    %v859 = vadd.f32 %v844, %v850
    %860 = vmatprep.subr.mxu0 0.0
    %861 = vmatpush1.msra.mxu0 0.0
    %862 = vmatprep.subr.mxu0 0.0
    %863 = vmatpush1.msra.mxu0 0.0
    %864 = vmatprep.subr.mxu0 0.0
    %865 = vmatpush1.msra.mxu0 0.0
    %866 = vmatprep.subr.mxu0 0.0
    %867 = vmatpush1.msra.mxu0 0.0
    %868 = vmatprep.subr.mxu0 0.0
    %869 = vmatpush1.msra.mxu0 0.0
    %870 = vmatprep.subr.mxu0 0.0
    %871 = vmatpush1.msra.mxu0 0.0
    %872 = vmatprep.subr.mxu0 0.0
    %873 = vmatpush1.msra.mxu0 0.0
    %874 = vmatprep.subr.mxu0 0.0
    %875 = vmatpush1.msra.mxu0 0.0
    %876 = vmatprep.subr.mxu0 0.0
    %877 = vmatpush1.msra.mxu0 0.0
    %878 = vmatprep.subr.mxu0 0.0
    %879 = vmatpush1.msra.mxu0 0.0
    %880 = vmatprep.subr.mxu0 0.0
    %881 = vmatpush1.msra.mxu0 0.0
    %882 = vmatprep.subr.mxu0 0.0
    %883 = vmatpush1.msra.mxu0 0.0
    %884 = vmatprep.subr.mxu0 0.0
    %885 = vmatpush1.msra.mxu0 0.0
    %886 = vmatprep.subr.mxu0 0.0
    %887 = vmatpush1.msra.mxu0 0.0
    %888 = vmatprep.subr.mxu0 0.0
    %889 = vmatpush1.msra.mxu0 %v467
    %890 = vmatprep.subr.mxu0 0.0
    %891 = vmatpush1.msra.mxu0 %v466
    %892 = vmatprep.subr.mxu0 0.0
    %893 = vmatpush2.msra.mxu0 0.0
    %894 = vmatprep.subr.mxu0 0.0
    %895 = vmatpush2.msra.mxu0 0.0
    %896 = vmatprep.subr.mxu0 0.0
    %897 = vmatpush2.msra.mxu0 0.0
    %898 = vmatprep.subr.mxu0 0.0
    %899 = vmatpush2.msra.mxu0 0.0
    %900 = vmatprep.subr.mxu0 0.0
    %901 = vmatpush2.msra.mxu0 0.0
    %902 = vmatprep.subr.mxu0 0.0
    %903 = vmatpush2.msra.mxu0 0.0
    %904 = vmatprep.subr.mxu0 0.0
    %905 = vmatpush2.msra.mxu0 0.0
    %906 = vmatprep.subr.mxu0 0.0
    %907 = vmatpush2.msra.mxu0 0.0
    %908 = vmatprep.subr.mxu0 0.0
    %909 = vmatpush2.msra.mxu0 0.0
    %910 = vmatprep.subr.mxu0 0.0
    %911 = vmatpush2.msra.mxu0 0.0
    %912 = vmatprep.subr.mxu0 0.0
    %913 = vmatpush2.msra.mxu0 0.0
    %914 = vmatprep.subr.mxu0 0.0
    %915 = vmatpush2.msra.mxu0 0.0
    %916 = vmatprep.subr.mxu0 0.0
    %917 = vmatpush2.msra.mxu0 0.0
    %918 = vmatprep.subr.mxu0 0.0
    %919 = vmatpush2.msra.mxu0 0.0
    %920 = vmatprep.subr.mxu0 0.0
    %921 = vmatpush2.msra.mxu0 0.0
    %922 = vmatprep.subr.mxu0 0.0
    %923 = vmatpush2.msra.mxu0 0.0
    %924 = vmatprep.mubr.f32.mxu0 0.0
    %925 = vmatmul.mubr.f32.gmra.mxu0 %v604
    %v926 = vpop.f32.mrf.mxu0
    %v927 = vadd.f32 0.0, %v926
    %v928 = vpop.f32.mrf.mxu0
    %929 = vmatprep.mubr.f32.mxu0 0.0
    %930 = vmatmul.mubr.f32.gmra.mxu0 %v607
    %v931 = vpop.f32.mrf.mxu0
    %v932 = vadd.f32 0.0, %v931
    %v933 = vpop.f32.mrf.mxu0
    %934 = vmatprep.mubr.f32.mxu0 0.0
    %935 = vmatmul.mubr.f32.gmra.mxu0 %v610
    %v936 = vpop.f32.mrf.mxu0
    %v937 = vadd.f32 0.0, %v936
    %v938 = vpop.f32.mrf.mxu0
    %939 = vmatprep.mubr.f32.mxu0 0.0
    %940 = vmatmul.mubr.f32.gmra.mxu0 %v613
    %v941 = vpop.f32.mrf.mxu0
    %v942 = vadd.f32 0.0, %v941
    %v943 = vpop.f32.mrf.mxu0
    %944 = vmatprep.mubr.f32.mxu0 0.0
    %945 = vmatmul.mubr.f32.gmra.mxu0 %v616
    %v946 = vpop.f32.mrf.mxu0
    %v947 = vadd.f32 0.0, %v946
    %v948 = vpop.f32.mrf.mxu0
    %949 = vmatprep.mubr.f32.mxu0 0.0
    %950 = vmatmul.mubr.f32.gmra.mxu0 %v619
    %v951 = vpop.f32.mrf.mxu0
    %v952 = vadd.f32 0.0, %v951
    %v953 = vpop.f32.mrf.mxu0
    %954 = vmatprep.mubr.f32.mxu0 0.0
    %955 = vmatmul.mubr.f32.gmra.mxu0 %v727
    %v956 = vpop.f32.mrf.mxu0
    %v957 = vadd.f32 0.0, %v956
    %v958 = vpop.f32.mrf.mxu0
    %959 = vmatprep.mubr.f32.mxu0 0.0
    %960 = vmatmul.mubr.f32.gmra.mxu0 %v730
    %v961 = vpop.f32.mrf.mxu0
    %v962 = vadd.f32 0.0, %v961
    %v963 = vpop.f32.mrf.mxu0
    %964 = vdwg.mxu0
    %965 = vmatprep.subr.mxu0 0.0
    %966 = vmatpush1.msra.mxu0 0.0
    %967 = vmatprep.subr.mxu0 0.0
    %968 = vmatpush1.msra.mxu0 0.0
    %969 = vmatprep.subr.mxu0 0.0
    %970 = vmatpush1.msra.mxu0 0.0
    %971 = vmatprep.subr.mxu0 0.0
    %972 = vmatpush1.msra.mxu0 0.0
    %973 = vmatprep.subr.mxu0 0.0
    %974 = vmatpush1.msra.mxu0 0.0
    %975 = vmatprep.subr.mxu0 0.0
    %976 = vmatpush1.msra.mxu0 0.0
    %977 = vmatprep.subr.mxu0 0.0
    %978 = vmatpush1.msra.mxu0 0.0
    %979 = vmatprep.subr.mxu0 0.0
    %980 = vmatpush1.msra.mxu0 0.0
    %981 = vmatprep.subr.mxu0 0.0
    %982 = vmatpush1.msra.mxu0 0.0
    %983 = vmatprep.subr.mxu0 0.0
    %984 = vmatpush1.msra.mxu0 0.0
    %985 = vmatprep.subr.mxu0 0.0
    %986 = vmatpush1.msra.mxu0 0.0
    %987 = vmatprep.subr.mxu0 0.0
    %988 = vmatpush1.msra.mxu0 0.0
    %989 = vmatprep.subr.mxu0 0.0
    %990 = vmatpush1.msra.mxu0 0.0
    %991 = vmatprep.subr.mxu0 0.0
    %992 = vmatpush1.msra.mxu0 0.0
    %993 = vmatprep.subr.mxu0 0.0
    %994 = vmatpush1.msra.mxu0 %v465
    %995 = vmatprep.subr.mxu0 0.0
    %996 = vmatpush1.msra.mxu0 %v464
    %997 = vmatprep.subr.mxu0 0.0
    %998 = vmatpush2.msra.mxu0 0.0
    %999 = vmatprep.subr.mxu0 0.0
    %1000 = vmatpush2.msra.mxu0 0.0
    %1001 = vmatprep.subr.mxu0 0.0
    %1002 = vmatpush2.msra.mxu0 0.0
    %1003 = vmatprep.subr.mxu0 0.0
    %1004 = vmatpush2.msra.mxu0 0.0
    %1005 = vmatprep.subr.mxu0 0.0
    %1006 = vmatpush2.msra.mxu0 0.0
    %1007 = vmatprep.subr.mxu0 0.0
    %1008 = vmatpush2.msra.mxu0 0.0
    %1009 = vmatprep.subr.mxu0 0.0
    %1010 = vmatpush2.msra.mxu0 0.0
    %1011 = vmatprep.subr.mxu0 0.0
    %1012 = vmatpush2.msra.mxu0 0.0
    %1013 = vmatprep.subr.mxu0 0.0
    %1014 = vmatpush2.msra.mxu0 0.0
    %1015 = vmatprep.subr.mxu0 0.0
    %1016 = vmatpush2.msra.mxu0 0.0
    %1017 = vmatprep.subr.mxu0 0.0
    %1018 = vmatpush2.msra.mxu0 0.0
    %1019 = vmatprep.subr.mxu0 0.0
    %1020 = vmatpush2.msra.mxu0 0.0
    %1021 = vmatprep.subr.mxu0 0.0
    %1022 = vmatpush2.msra.mxu0 0.0
    %1023 = vmatprep.subr.mxu0 0.0
    %1024 = vmatpush2.msra.mxu0 0.0
    %1025 = vmatprep.subr.mxu0 0.0
    %1026 = vmatpush2.msra.mxu0 0.0
    %1027 = vmatprep.subr.mxu0 0.0
    %1028 = vmatpush2.msra.mxu0 0.0
    %1029 = vmatprep.mubr.f32.mxu0 0.0
    %1030 = vmatmul.mubr.f32.gmra.mxu0 %v472
    %v1031 = vpop.f32.mrf.mxu0
    %v1032 = vadd.f32 %v927, %v1031
    %v1033 = vpop.f32.mrf.mxu0
    %1034 = vmatprep.mubr.f32.mxu0 0.0
    %1035 = vmatmul.mubr.f32.gmra.mxu0 %v475
    %v1036 = vpop.f32.mrf.mxu0
    %v1037 = vadd.f32 %v932, %v1036
    %v1038 = vpop.f32.mrf.mxu0
    %1039 = vmatprep.mubr.f32.mxu0 0.0
    %1040 = vmatmul.mubr.f32.gmra.mxu0 %v478
    %v1041 = vpop.f32.mrf.mxu0
    %v1042 = vadd.f32 %v937, %v1041
    %v1043 = vpop.f32.mrf.mxu0
    %1044 = vmatprep.mubr.f32.mxu0 0.0
    %1045 = vmatmul.mubr.f32.gmra.mxu0 %v481
    %v1046 = vpop.f32.mrf.mxu0
    %v1047 = vadd.f32 %v942, %v1046
    %v1048 = vpop.f32.mrf.mxu0
    %1049 = vmatprep.mubr.f32.mxu0 0.0
    %1050 = vmatmul.mubr.f32.gmra.mxu0 %v484
    %v1051 = vpop.f32.mrf.mxu0
    %v1052 = vadd.f32 %v947, %v1051
    %v1053 = vpop.f32.mrf.mxu0
    %1054 = vmatprep.mubr.f32.mxu0 0.0
    %1055 = vmatmul.mubr.f32.gmra.mxu0 %v487
    %v1056 = vpop.f32.mrf.mxu0
    %v1057 = vadd.f32 %v952, %v1056
    %v1058 = vpop.f32.mrf.mxu0
    %1059 = vmatprep.mubr.f32.mxu0 0.0
    %1060 = vmatmul.mubr.f32.gmra.mxu0 %v490
    %v1061 = vpop.f32.mrf.mxu0
    %v1062 = vadd.f32 %v957, %v1061
    %v1063 = vpop.f32.mrf.mxu0
    %1064 = vmatprep.mubr.f32.mxu0 0.0
    %1065 = vmatmul.mubr.f32.gmra.mxu0 %v493
    %v1066 = vpop.f32.mrf.mxu0
    %v1067 = vadd.f32 %v962, %v1066
    %v1068 = vpop.f32.mrf.mxu0
    %1069 = vdwg.mxu0
    %1070 = vmatprep.subr.mxu0 0.0
    %1071 = vmatpush1.msra.mxu0 0.0
    %1072 = vmatprep.subr.mxu0 0.0
    %1073 = vmatpush1.msra.mxu0 0.0
    %1074 = vmatprep.subr.mxu0 0.0
    %1075 = vmatpush1.msra.mxu0 0.0
    %1076 = vmatprep.subr.mxu0 0.0
    %1077 = vmatpush1.msra.mxu0 0.0
    %1078 = vmatprep.subr.mxu0 0.0
    %1079 = vmatpush1.msra.mxu0 0.0
    %1080 = vmatprep.subr.mxu0 0.0
    %1081 = vmatpush1.msra.mxu0 0.0
    %1082 = vmatprep.subr.mxu0 0.0
    %1083 = vmatpush1.msra.mxu0 0.0
    %1084 = vmatprep.subr.mxu0 0.0
    %1085 = vmatpush1.msra.mxu0 0.0
    %1086 = vmatprep.subr.mxu0 0.0
    %1087 = vmatpush1.msra.mxu0 0.0
    %1088 = vmatprep.subr.mxu0 0.0
    %1089 = vmatpush1.msra.mxu0 0.0
    %1090 = vmatprep.subr.mxu0 0.0
    %1091 = vmatpush1.msra.mxu0 0.0
    %1092 = vmatprep.subr.mxu0 0.0
    %1093 = vmatpush1.msra.mxu0 0.0
    %1094 = vmatprep.subr.mxu0 0.0
    %1095 = vmatpush1.msra.mxu0 0.0
    %1096 = vmatprep.subr.mxu0 0.0
    %1097 = vmatpush1.msra.mxu0 0.0
    %1098 = vmatprep.subr.mxu0 0.0
    %1099 = vmatpush1.msra.mxu0 %v469
    %1100 = vmatprep.subr.mxu0 0.0
    %1101 = vmatpush1.msra.mxu0 %v468
    %1102 = vmatprep.subr.mxu0 0.0
    %1103 = vmatpush2.msra.mxu0 0.0
    %1104 = vmatprep.subr.mxu0 0.0
    %1105 = vmatpush2.msra.mxu0 0.0
    %1106 = vmatprep.subr.mxu0 0.0
    %1107 = vmatpush2.msra.mxu0 0.0
    %1108 = vmatprep.subr.mxu0 0.0
    %1109 = vmatpush2.msra.mxu0 0.0
    %1110 = vmatprep.subr.mxu0 0.0
    %1111 = vmatpush2.msra.mxu0 0.0
    %1112 = vmatprep.subr.mxu0 0.0
    %1113 = vmatpush2.msra.mxu0 0.0
    %1114 = vmatprep.subr.mxu0 0.0
    %1115 = vmatpush2.msra.mxu0 0.0
    %1116 = vmatprep.subr.mxu0 0.0
    %1117 = vmatpush2.msra.mxu0 0.0
    %1118 = vmatprep.subr.mxu0 0.0
    %1119 = vmatpush2.msra.mxu0 0.0
    %1120 = vmatprep.subr.mxu0 0.0
    %1121 = vmatpush2.msra.mxu0 0.0
    %1122 = vmatprep.subr.mxu0 0.0
    %1123 = vmatpush2.msra.mxu0 0.0
    %1124 = vmatprep.subr.mxu0 0.0
    %1125 = vmatpush2.msra.mxu0 0.0
    %1126 = vmatprep.subr.mxu0 0.0
    %1127 = vmatpush2.msra.mxu0 0.0
    %1128 = vmatprep.subr.mxu0 0.0
    %1129 = vmatpush2.msra.mxu0 0.0
    %1130 = vmatprep.subr.mxu0 0.0
    %1131 = vmatpush2.msra.mxu0 0.0
    %1132 = vmatprep.subr.mxu0 0.0
    %1133 = vmatpush2.msra.mxu0 0.0
    %1134 = vmatprep.mubr.f32.mxu0 0.0
    %1135 = vmatmul.mubr.f32.gmra.mxu0 %v478
    %v1136 = vpop.f32.mrf.mxu0
    %v1137 = vadd.f32 0.0, %v1136
    %v1138 = vpop.f32.mrf.mxu0
    %1139 = vmatprep.mubr.f32.mxu0 0.0
    %1140 = vmatmul.mubr.f32.gmra.mxu0 %v481
    %v1141 = vpop.f32.mrf.mxu0
    %v1142 = vadd.f32 0.0, %v1141
    %v1143 = vpop.f32.mrf.mxu0
    %1144 = vmatprep.mubr.f32.mxu0 0.0
    %1145 = vmatmul.mubr.f32.gmra.mxu0 %v484
    %v1146 = vpop.f32.mrf.mxu0
    %v1147 = vadd.f32 0.0, %v1146
    %v1148 = vpop.f32.mrf.mxu0
    %1149 = vmatprep.mubr.f32.mxu0 0.0
    %1150 = vmatmul.mubr.f32.gmra.mxu0 %v487
    %v1151 = vpop.f32.mrf.mxu0
    %v1152 = vadd.f32 0.0, %v1151
    %v1153 = vpop.f32.mrf.mxu0
    %1154 = vmatprep.mubr.f32.mxu0 0.0
    %1155 = vmatmul.mubr.f32.gmra.mxu0 %v490
    %v1156 = vpop.f32.mrf.mxu0
    %v1157 = vadd.f32 0.0, %v1156
    %v1158 = vpop.f32.mrf.mxu0
    %1159 = vmatprep.mubr.f32.mxu0 0.0
    %1160 = vmatmul.mubr.f32.gmra.mxu0 %v493
    %v1161 = vpop.f32.mrf.mxu0
    %v1162 = vadd.f32 0.0, %v1161
    %v1163 = vpop.f32.mrf.mxu0
    %1164 = vmatprep.mubr.f32.mxu0 0.0
    %1165 = vmatmul.mubr.f32.gmra.mxu0 %v601
    %v1166 = vpop.f32.mrf.mxu0
    %v1167 = vadd.f32 0.0, %v1166
    %v1168 = vpop.f32.mrf.mxu0
    %1169 = vmatprep.mubr.f32.mxu0 0.0
    %1170 = vmatmul.mubr.f32.gmra.mxu0 %v601
    %v1171 = vpop.f32.mrf.mxu0
    %v1172 = vadd.f32 0.0, %v1171
    %v1173 = vpop.f32.mrf.mxu0
    %1174 = vdwg.mxu0
    %v1175 = vadd.f32 %v1032, %v1137
    %v1176 = vadd.f32 %v1037, %v1142
    %v1177 = vadd.f32 %v1042, %v1147
    %v1178 = vadd.f32 %v1047, %v1152
    %v1179 = vadd.f32 %v1052, %v1157
    %v1180 = vadd.f32 %v1057, %v1162
    %v1181 = vadd.f32 %v1062, %v1167
    %v1182 = vadd.f32 %v1067, %v1172
    %v1183 = vadd.f32 %v1175, %v850
    %v1184 = vadd.f32 %v1176, %v850
    %v1185 = vadd.f32 %v1177, %v850
    %v1186 = vadd.f32 %v1178, %v850
    %v1187 = vadd.f32 %v1179, %v850
    %v1188 = vadd.f32 %v1180, %v850
    %v1189 = vadd.f32 %v1181, %v850
    %v1190 = vadd.f32 %v1182, %v850
    %v1191 = vmax.f32 %v852, 0.0
    %v1192 = vmax.f32 %v853, 0.0
    %v1193 = vmax.f32 %v854, 0.0
    %v1194 = vmax.f32 %v855, 0.0
    %v1195 = vmax.f32 %v856, 0.0
    %v1196 = vmax.f32 %v857, 0.0
    %v1197 = vmax.f32 %v858, 0.0
    %v1198 = vmax.f32 %v859, 0.0
    %v1199 = vmax.f32 %v1183, 0.0
    %v1200 = vmax.f32 %v1184, 0.0
    %v1201 = vmax.f32 %v1185, 0.0
    %v1202 = vmax.f32 %v1186, 0.0
    %v1203 = vmax.f32 %v1187, 0.0
    %v1204 = vmax.f32 %v1188, 0.0
    %v1205 = vmax.f32 %v1189, 0.0
    %v1206 = vmax.f32 %v1190, 0.0
    %v1207 = vmax.f32 %v1191, %v1199
    %v1208 = vmax.f32 %v1192, %v1200
    %v1209 = vmax.f32 %v1193, %v1201
    %v1210 = vmax.f32 %v1194, %v1202
    %v1211 = vmax.f32 %v1195, %v1203
    %v1212 = vmax.f32 %v1196, %v1204
    %v1213 = vmax.f32 %v1197, %v1205
    %v1214 = vmax.f32 %v1198, %v1206
    %1217 = vrot.lane.b32.xlu0 %v1209, 32
    %v1218 = vpop.permute.xlu0 %1217
    %1219 = vrot.lane.b32.xlu0 %v1210, 32
    %v1220 = vpop.permute.xlu0 %1219
    %1225 = vrot.lane.b32.xlu0 %v1211, 64
    %v1226 = vpop.permute.xlu0 %1225
    %1227 = vrot.lane.b32.xlu0 %v1212, 64
    %v1228 = vpop.permute.xlu0 %1227
    %1233 = vrot.lane.b32.xlu0 %v1213, 96
    %v1234 = vpop.permute.xlu0 %1233
    %1235 = vrot.lane.b32.xlu0 %v1214, 96
    %v1236 = vpop.permute.xlu0 %1235
    %vm1239 = vcmask 261120
    %v1240 = vsel %vm1239, %v1207, %v1218
    %v1241 = vsel %vm1239, %v1208, %v1220
    %vm1242 = vcmask 523264
    %v1243 = vsel %vm1242, %v1240, %v1226
    %v1244 = vsel %vm1242, %v1241, %v1228
    %vm1245 = vcmask 785408
    %v1246 = vsel %vm1245, %v1243, %v1234
    %v1247 = vsel %vm1245, %v1244, %v1236
    %v1248 = vld [vmem:[%s5] sm:$0xff]
    %v1249 = vld [vmem:[%s5 + $0x8] sm:$0xff]
    %v1250 = vld [vmem:[%s5 + $0x10] sm:$0xff]
    %v1251 = vld [vmem:[%s5 + $0x18] sm:$0xff]
    %v1252 = vld [vmem:[%s5 + $0x20] sm:$0xff]
    %v1253 = vld [vmem:[%s5 + $0x28] sm:$0xff]
    %v1254 = vld [vmem:[%s5 + $0x30] sm:$0xff]
    %v1255 = vld [vmem:[%s5 + $0x38] sm:$0xff]
    %v1256 = vld [vmem:[%s5 + $0x40] sm:$0xff]
    %v1257 = vld [vmem:[%s5 + $0x48] sm:$0xff]
    %v1258 = vld [vmem:[%s5 + $0x50] sm:$0xff]
    %v1259 = vld [vmem:[%s5 + $0x58] sm:$0xff]
    %v1260 = vld [vmem:[%s5 + $0x60] sm:$0xff]
    %v1261 = vld [vmem:[%s5 + $0x68] sm:$0xff]
    %v1262 = vld [vmem:[%s5 + $0x70] sm:$0xff]
    %v1263 = vld [vmem:[%s5 + $0x78] sm:$0xff]
    %v1264 = vld [vmem:[%s7] sm:$0x1]
    %v1266 = vlaneseq
    %v1267 = vshrl.u32 %v1266, 7
    %v1268 = vsub.s32 0, %v1267
    %v1269 = vrot.slane %v1264, %v1268
    %1271 = vmatprep.subr.mxu0 0.0
    %1272 = vmatpush1.msra.mxu0 %v1263
    %1273 = vmatprep.subr.mxu0 0.0
    %1274 = vmatpush1.msra.mxu0 %v1262
    %1275 = vmatprep.subr.mxu0 0.0
    %1276 = vmatpush1.msra.mxu0 %v1261
    %1277 = vmatprep.subr.mxu0 0.0
    %1278 = vmatpush1.msra.mxu0 %v1260
    %1279 = vmatprep.subr.mxu0 0.0
    %1280 = vmatpush1.msra.mxu0 %v1259
    %1281 = vmatprep.subr.mxu0 0.0
    %1282 = vmatpush1.msra.mxu0 %v1258
    %1283 = vmatprep.subr.mxu0 0.0
    %1284 = vmatpush1.msra.mxu0 %v1257
    %1285 = vmatprep.subr.mxu0 0.0
    %1286 = vmatpush1.msra.mxu0 %v1256
    %1287 = vmatprep.subr.mxu0 0.0
    %1288 = vmatpush1.msra.mxu0 %v1255
    %1289 = vmatprep.subr.mxu0 0.0
    %1290 = vmatpush1.msra.mxu0 %v1254
    %1291 = vmatprep.subr.mxu0 0.0
    %1292 = vmatpush1.msra.mxu0 %v1253
    %1293 = vmatprep.subr.mxu0 0.0
    %1294 = vmatpush1.msra.mxu0 %v1252
    %1295 = vmatprep.subr.mxu0 0.0
    %1296 = vmatpush1.msra.mxu0 %v1251
    %1297 = vmatprep.subr.mxu0 0.0
    %1298 = vmatpush1.msra.mxu0 %v1250
    %1299 = vmatprep.subr.mxu0 0.0
    %1300 = vmatpush1.msra.mxu0 %v1249
    %1301 = vmatprep.subr.mxu0 0.0
    %1302 = vmatpush1.msra.mxu0 %v1248
    %1303 = vmatprep.subr.mxu0 0.0
    %1304 = vmatpush2.msra.mxu0 0.0
    %1305 = vmatprep.subr.mxu0 0.0
    %1306 = vmatpush2.msra.mxu0 0.0
    %1307 = vmatprep.subr.mxu0 0.0
    %1308 = vmatpush2.msra.mxu0 0.0
    %1309 = vmatprep.subr.mxu0 0.0
    %1310 = vmatpush2.msra.mxu0 0.0
    %1311 = vmatprep.subr.mxu0 0.0
    %1312 = vmatpush2.msra.mxu0 0.0
    %1313 = vmatprep.subr.mxu0 0.0
    %1314 = vmatpush2.msra.mxu0 0.0
    %1315 = vmatprep.subr.mxu0 0.0
    %1316 = vmatpush2.msra.mxu0 0.0
    %1317 = vmatprep.subr.mxu0 0.0
    %1318 = vmatpush2.msra.mxu0 0.0
    %1319 = vmatprep.subr.mxu0 0.0
    %1320 = vmatpush2.msra.mxu0 0.0
    %1321 = vmatprep.subr.mxu0 0.0
    %1322 = vmatpush2.msra.mxu0 0.0
    %1323 = vmatprep.subr.mxu0 0.0
    %1324 = vmatpush2.msra.mxu0 0.0
    %1325 = vmatprep.subr.mxu0 0.0
    %1326 = vmatpush2.msra.mxu0 0.0
    %1327 = vmatprep.subr.mxu0 0.0
    %1328 = vmatpush2.msra.mxu0 0.0
    %1329 = vmatprep.subr.mxu0 0.0
    %1330 = vmatpush2.msra.mxu0 0.0
    %1331 = vmatprep.subr.mxu0 0.0
    %1332 = vmatpush2.msra.mxu0 0.0
    %1333 = vmatprep.subr.mxu0 0.0
    %1334 = vmatpush2.msra.mxu0 0.0
    %1335 = vmatprep.mubr.f32.mxu0 0.0
    %1336 = vmatmul.mubr.f32.gmra.mxu0 %v1246
    %v1337 = vpop.f32.mrf.mxu0
    %v1338 = vadd.f32 %v1269, %v1337
    %v1339 = vpop.f32.mrf.mxu0
    %1340 = vmatprep.mubr.f32.mxu0 0.0
    %1341 = vmatmul.mubr.f32.gmra.mxu0 %v1247
    %v1342 = vpop.f32.mrf.mxu0
    %v1343 = vadd.f32 %v1269, %v1342
    %v1344 = vpop.f32.mrf.mxu0
    %1345 = vdwg.mxu0
    %v1346 = vld [vmem:[%s6] sm:$0xff]
    %v1347 = vld [vmem:[%s6 + $0x8] sm:$0xff]
    %v1348 = vld [vmem:[%s6 + $0x10] sm:$0xff]
    %v1349 = vld [vmem:[%s6 + $0x18] sm:$0xff]
    %v1350 = vsel %vm1239, 0.0, 0
    %1352 = vmatprep.subr.mxu0 0.0
    %1353 = vmatpush1.msra.mxu0 0.0
    %1354 = vmatprep.subr.mxu0 0.0
    %1355 = vmatpush1.msra.mxu0 0.0
    %1356 = vmatprep.subr.mxu0 0.0
    %1357 = vmatpush1.msra.mxu0 0.0
    %1358 = vmatprep.subr.mxu0 0.0
    %1359 = vmatpush1.msra.mxu0 0.0
    %1360 = vmatprep.subr.mxu0 0.0
    %1361 = vmatpush1.msra.mxu0 0.0
    %1362 = vmatprep.subr.mxu0 0.0
    %1363 = vmatpush1.msra.mxu0 0.0
    %1364 = vmatprep.subr.mxu0 0.0
    %1365 = vmatpush1.msra.mxu0 0.0
    %1366 = vmatprep.subr.mxu0 0.0
    %1367 = vmatpush1.msra.mxu0 0.0
    %1368 = vmatprep.subr.mxu0 0.0
    %1369 = vmatpush1.msra.mxu0 0.0
    %1370 = vmatprep.subr.mxu0 0.0
    %1371 = vmatpush1.msra.mxu0 0.0
    %1372 = vmatprep.subr.mxu0 0.0
    %1373 = vmatpush1.msra.mxu0 0.0
    %1374 = vmatprep.subr.mxu0 0.0
    %1375 = vmatpush1.msra.mxu0 0.0
    %1376 = vmatprep.subr.mxu0 0.0
    %1377 = vmatpush1.msra.mxu0 %v1349
    %1378 = vmatprep.subr.mxu0 0.0
    %1379 = vmatpush1.msra.mxu0 %v1348
    %1380 = vmatprep.subr.mxu0 0.0
    %1381 = vmatpush1.msra.mxu0 %v1347
    %1382 = vmatprep.subr.mxu0 0.0
    %1383 = vmatpush1.msra.mxu0 %v1346
    %1384 = vmatprep.subr.mxu0 0.0
    %1385 = vmatpush2.msra.mxu0 0.0
    %1386 = vmatprep.subr.mxu0 0.0
    %1387 = vmatpush2.msra.mxu0 0.0
    %1388 = vmatprep.subr.mxu0 0.0
    %1389 = vmatpush2.msra.mxu0 0.0
    %1390 = vmatprep.subr.mxu0 0.0
    %1391 = vmatpush2.msra.mxu0 0.0
    %1392 = vmatprep.subr.mxu0 0.0
    %1393 = vmatpush2.msra.mxu0 0.0
    %1394 = vmatprep.subr.mxu0 0.0
    %1395 = vmatpush2.msra.mxu0 0.0
    %1396 = vmatprep.subr.mxu0 0.0
    %1397 = vmatpush2.msra.mxu0 0.0
    %1398 = vmatprep.subr.mxu0 0.0
    %1399 = vmatpush2.msra.mxu0 0.0
    %1400 = vmatprep.subr.mxu0 0.0
    %1401 = vmatpush2.msra.mxu0 0.0
    %1402 = vmatprep.subr.mxu0 0.0
    %1403 = vmatpush2.msra.mxu0 0.0
    %1404 = vmatprep.subr.mxu0 0.0
    %1405 = vmatpush2.msra.mxu0 0.0
    %1406 = vmatprep.subr.mxu0 0.0
    %1407 = vmatpush2.msra.mxu0 0.0
    %1408 = vmatprep.subr.mxu0 0.0
    %1409 = vmatpush2.msra.mxu0 0.0
    %1410 = vmatprep.subr.mxu0 0.0
    %1411 = vmatpush2.msra.mxu0 0.0
    %1412 = vmatprep.subr.mxu0 0.0
    %1413 = vmatpush2.msra.mxu0 0.0
    %1414 = vmatprep.subr.mxu0 0.0
    %1415 = vmatpush2.msra.mxu0 0.0
    %1416 = vmatprep.mubr.f32.mxu0 0.0
    %1417 = vmatmul.mubr.f32.gmra.mxu0 %v1350
    %v1418 = vpop.f32.mrf.mxu0
    %v1419 = vadd.f32 0.0, %v1418
    %v1420 = vpop.f32.mrf.mxu0
    %1421 = vdwg.mxu0
    %v1422 = vadd.f32 %v1338, %v1419
    %v1423 = vxor.u32 %v1422, 2147483648
    %v1424 = vmul.f32 %v1423, 1.442695
    %v1425 = vpow.pop %v1424
    %v1426 = vadd.f32 %v1425, 1.0
    %v1427 = vrcp.pop %v1426
    %v1428 = vmul.f32 1.0, %v1427
    %v1429 = vtanh.pop %v1422
    %v1430 = vmul.f32 %v1428, 0.0
    %1432 = vrot.lane.b32.xlu0 %v1429, 64
    %v1433 = vpop.permute.xlu0 %1432
    %v1435 = vmul.f32 %v1428, %v1433
    %1437 = vrot.lane.b32.xlu0 %v1435, 32
    %v1438 = vpop.permute.xlu0 %1437
    %v1440 = vadd.f32 %v1430, %v1438
    %v1441 = vtanh.pop %v1440
    %1443 = vrot.lane.b32.xlu0 %v1441, 64
    %v1444 = vpop.permute.xlu0 %1443
    %v1446 = vmul.f32 %v1428, %v1444
    %1448 = vrot.lane.b32.xlu0 %v1446, 32
    %v1449 = vpop.permute.xlu0 %1448
    %v1450 = vsel %vm1239, %v1449, 0
    %1452 = vmatprep.subr.mxu0 0.0
    %1453 = vmatpush1.msra.mxu0 0.0
    %1454 = vmatprep.subr.mxu0 0.0
    %1455 = vmatpush1.msra.mxu0 0.0
    %1456 = vmatprep.subr.mxu0 0.0
    %1457 = vmatpush1.msra.mxu0 0.0
    %1458 = vmatprep.subr.mxu0 0.0
    %1459 = vmatpush1.msra.mxu0 0.0
    %1460 = vmatprep.subr.mxu0 0.0
    %1461 = vmatpush1.msra.mxu0 0.0
    %1462 = vmatprep.subr.mxu0 0.0
    %1463 = vmatpush1.msra.mxu0 0.0
    %1464 = vmatprep.subr.mxu0 0.0
    %1465 = vmatpush1.msra.mxu0 0.0
    %1466 = vmatprep.subr.mxu0 0.0
    %1467 = vmatpush1.msra.mxu0 0.0
    %1468 = vmatprep.subr.mxu0 0.0
    %1469 = vmatpush1.msra.mxu0 0.0
    %1470 = vmatprep.subr.mxu0 0.0
    %1471 = vmatpush1.msra.mxu0 0.0
    %1472 = vmatprep.subr.mxu0 0.0
    %1473 = vmatpush1.msra.mxu0 0.0
    %1474 = vmatprep.subr.mxu0 0.0
    %1475 = vmatpush1.msra.mxu0 0.0
    %1476 = vmatprep.subr.mxu0 0.0
    %1477 = vmatpush1.msra.mxu0 %v1349
    %1478 = vmatprep.subr.mxu0 0.0
    %1479 = vmatpush1.msra.mxu0 %v1348
    %1480 = vmatprep.subr.mxu0 0.0
    %1481 = vmatpush1.msra.mxu0 %v1347
    %1482 = vmatprep.subr.mxu0 0.0
    %1483 = vmatpush1.msra.mxu0 %v1346
    %1484 = vmatprep.subr.mxu0 0.0
    %1485 = vmatpush2.msra.mxu0 0.0
    %1486 = vmatprep.subr.mxu0 0.0
    %1487 = vmatpush2.msra.mxu0 0.0
    %1488 = vmatprep.subr.mxu0 0.0
    %1489 = vmatpush2.msra.mxu0 0.0
    %1490 = vmatprep.subr.mxu0 0.0
    %1491 = vmatpush2.msra.mxu0 0.0
    %1492 = vmatprep.subr.mxu0 0.0
    %1493 = vmatpush2.msra.mxu0 0.0
    %1494 = vmatprep.subr.mxu0 0.0
    %1495 = vmatpush2.msra.mxu0 0.0
    %1496 = vmatprep.subr.mxu0 0.0
    %1497 = vmatpush2.msra.mxu0 0.0
    %1498 = vmatprep.subr.mxu0 0.0
    %1499 = vmatpush2.msra.mxu0 0.0
    %1500 = vmatprep.subr.mxu0 0.0
    %1501 = vmatpush2.msra.mxu0 0.0
    %1502 = vmatprep.subr.mxu0 0.0
    %1503 = vmatpush2.msra.mxu0 0.0
    %1504 = vmatprep.subr.mxu0 0.0
    %1505 = vmatpush2.msra.mxu0 0.0
    %1506 = vmatprep.subr.mxu0 0.0
    %1507 = vmatpush2.msra.mxu0 0.0
    %1508 = vmatprep.subr.mxu0 0.0
    %1509 = vmatpush2.msra.mxu0 0.0
    %1510 = vmatprep.subr.mxu0 0.0
    %1511 = vmatpush2.msra.mxu0 0.0
    %1512 = vmatprep.subr.mxu0 0.0
    %1513 = vmatpush2.msra.mxu0 0.0
    %1514 = vmatprep.subr.mxu0 0.0
    %1515 = vmatpush2.msra.mxu0 0.0
    %1516 = vmatprep.mubr.f32.mxu0 0.0
    %1517 = vmatmul.mubr.f32.gmra.mxu0 %v1450
    %v1518 = vpop.f32.mrf.mxu0
    %v1519 = vadd.f32 0.0, %v1518
    %v1520 = vpop.f32.mrf.mxu0
    %1521 = vdwg.mxu0
    %v1523 = vrot.slane %v1519, 6
    %v1525 = vadd.f32 %v1338, %v1523
    %v1526 = vxor.u32 %v1525, 2147483648
    %v1527 = vmul.f32 %v1526, 1.442695
    %v1528 = vpow.pop %v1527
    %v1529 = vadd.f32 %v1528, 1.0
    %v1530 = vrcp.pop %v1529
    %v1531 = vmul.f32 1.0, %v1530
    %v1532 = vtanh.pop %v1525
    %v1534 = vrot.slane %v1440, 6
    %v1536 = vmul.f32 %v1531, %v1534
    %1538 = vrot.lane.b32.xlu0 %v1532, 64
    %v1539 = vpop.permute.xlu0 %1538
    %v1541 = vmul.f32 %v1531, %v1539
    %1543 = vrot.lane.b32.xlu0 %v1541, 32
    %v1544 = vpop.permute.xlu0 %1543
    %v1546 = vadd.f32 %v1536, %v1544
    %v1547 = vtanh.pop %v1546
    %1549 = vrot.lane.b32.xlu0 %v1547, 64
    %v1550 = vpop.permute.xlu0 %1549
    %v1552 = vmul.f32 %v1531, %v1550
    %v1554 = vrot.slane %v1552, 2
    %1555 = vrot.lane.b32.xlu0 %v1554, 32
    %v1556 = vpop.permute.xlu0 %1555
    %v1557 = vsel %vm1239, %v1556, 0
    %1559 = vmatprep.subr.mxu0 0.0
    %1560 = vmatpush1.msra.mxu0 0.0
    %1561 = vmatprep.subr.mxu0 0.0
    %1562 = vmatpush1.msra.mxu0 0.0
    %1563 = vmatprep.subr.mxu0 0.0
    %1564 = vmatpush1.msra.mxu0 0.0
    %1565 = vmatprep.subr.mxu0 0.0
    %1566 = vmatpush1.msra.mxu0 0.0
    %1567 = vmatprep.subr.mxu0 0.0
    %1568 = vmatpush1.msra.mxu0 0.0
    %1569 = vmatprep.subr.mxu0 0.0
    %1570 = vmatpush1.msra.mxu0 0.0
    %1571 = vmatprep.subr.mxu0 0.0
    %1572 = vmatpush1.msra.mxu0 0.0
    %1573 = vmatprep.subr.mxu0 0.0
    %1574 = vmatpush1.msra.mxu0 0.0
    %1575 = vmatprep.subr.mxu0 0.0
    %1576 = vmatpush1.msra.mxu0 0.0
    %1577 = vmatprep.subr.mxu0 0.0
    %1578 = vmatpush1.msra.mxu0 0.0
    %1579 = vmatprep.subr.mxu0 0.0
    %1580 = vmatpush1.msra.mxu0 0.0
    %1581 = vmatprep.subr.mxu0 0.0
    %1582 = vmatpush1.msra.mxu0 0.0
    %1583 = vmatprep.subr.mxu0 0.0
    %1584 = vmatpush1.msra.mxu0 %v1349
    %1585 = vmatprep.subr.mxu0 0.0
    %1586 = vmatpush1.msra.mxu0 %v1348
    %1587 = vmatprep.subr.mxu0 0.0
    %1588 = vmatpush1.msra.mxu0 %v1347
    %1589 = vmatprep.subr.mxu0 0.0
    %1590 = vmatpush1.msra.mxu0 %v1346
    %1591 = vmatprep.subr.mxu0 0.0
    %1592 = vmatpush2.msra.mxu0 0.0
    %1593 = vmatprep.subr.mxu0 0.0
    %1594 = vmatpush2.msra.mxu0 0.0
    %1595 = vmatprep.subr.mxu0 0.0
    %1596 = vmatpush2.msra.mxu0 0.0
    %1597 = vmatprep.subr.mxu0 0.0
    %1598 = vmatpush2.msra.mxu0 0.0
    %1599 = vmatprep.subr.mxu0 0.0
    %1600 = vmatpush2.msra.mxu0 0.0
    %1601 = vmatprep.subr.mxu0 0.0
    %1602 = vmatpush2.msra.mxu0 0.0
    %1603 = vmatprep.subr.mxu0 0.0
    %1604 = vmatpush2.msra.mxu0 0.0
    %1605 = vmatprep.subr.mxu0 0.0
    %1606 = vmatpush2.msra.mxu0 0.0
    %1607 = vmatprep.subr.mxu0 0.0
    %1608 = vmatpush2.msra.mxu0 0.0
    %1609 = vmatprep.subr.mxu0 0.0
    %1610 = vmatpush2.msra.mxu0 0.0
    %1611 = vmatprep.subr.mxu0 0.0
    %1612 = vmatpush2.msra.mxu0 0.0
    %1613 = vmatprep.subr.mxu0 0.0
    %1614 = vmatpush2.msra.mxu0 0.0
    %1615 = vmatprep.subr.mxu0 0.0
    %1616 = vmatpush2.msra.mxu0 0.0
    %1617 = vmatprep.subr.mxu0 0.0
    %1618 = vmatpush2.msra.mxu0 0.0
    %1619 = vmatprep.subr.mxu0 0.0
    %1620 = vmatpush2.msra.mxu0 0.0
    %1621 = vmatprep.subr.mxu0 0.0
    %1622 = vmatpush2.msra.mxu0 0.0
    %1623 = vmatprep.mubr.f32.mxu0 0.0
    %1624 = vmatmul.mubr.f32.gmra.mxu0 %v1557
    %v1625 = vpop.f32.mrf.mxu0
    %v1626 = vadd.f32 0.0, %v1625
    %v1627 = vpop.f32.mrf.mxu0
    %1628 = vdwg.mxu0
    %v1630 = vrot.slane %v1626, 4
    %v1632 = vadd.f32 %v1338, %v1630
    %v1633 = vxor.u32 %v1632, 2147483648
    %v1634 = vmul.f32 %v1633, 1.442695
    %v1635 = vpow.pop %v1634
    %v1636 = vadd.f32 %v1635, 1.0
    %v1637 = vrcp.pop %v1636
    %v1638 = vmul.f32 1.0, %v1637
    %v1639 = vtanh.pop %v1632
    %v1641 = vrot.slane %v1546, 6
    %v1643 = vmul.f32 %v1638, %v1641
    %1645 = vrot.lane.b32.xlu0 %v1639, 64
    %v1646 = vpop.permute.xlu0 %1645
    %v1648 = vmul.f32 %v1638, %v1646
    %1650 = vrot.lane.b32.xlu0 %v1648, 32
    %v1651 = vpop.permute.xlu0 %1650
    %v1653 = vadd.f32 %v1643, %v1651
    %v1654 = vtanh.pop %v1653
    %1656 = vrot.lane.b32.xlu0 %v1654, 64
    %v1657 = vpop.permute.xlu0 %1656
    %v1659 = vmul.f32 %v1638, %v1657
    %v1661 = vrot.slane %v1659, 4
    %1662 = vrot.lane.b32.xlu0 %v1661, 32
    %v1663 = vpop.permute.xlu0 %1662
    %v1664 = vsel %vm1239, %v1663, 0
    %1666 = vmatprep.subr.mxu0 0.0
    %1667 = vmatpush1.msra.mxu0 0.0
    %1668 = vmatprep.subr.mxu0 0.0
    %1669 = vmatpush1.msra.mxu0 0.0
    %1670 = vmatprep.subr.mxu0 0.0
    %1671 = vmatpush1.msra.mxu0 0.0
    %1672 = vmatprep.subr.mxu0 0.0
    %1673 = vmatpush1.msra.mxu0 0.0
    %1674 = vmatprep.subr.mxu0 0.0
    %1675 = vmatpush1.msra.mxu0 0.0
    %1676 = vmatprep.subr.mxu0 0.0
    %1677 = vmatpush1.msra.mxu0 0.0
    %1678 = vmatprep.subr.mxu0 0.0
    %1679 = vmatpush1.msra.mxu0 0.0
    %1680 = vmatprep.subr.mxu0 0.0
    %1681 = vmatpush1.msra.mxu0 0.0
    %1682 = vmatprep.subr.mxu0 0.0
    %1683 = vmatpush1.msra.mxu0 0.0
    %1684 = vmatprep.subr.mxu0 0.0
    %1685 = vmatpush1.msra.mxu0 0.0
    %1686 = vmatprep.subr.mxu0 0.0
    %1687 = vmatpush1.msra.mxu0 0.0
    %1688 = vmatprep.subr.mxu0 0.0
    %1689 = vmatpush1.msra.mxu0 0.0
    %1690 = vmatprep.subr.mxu0 0.0
    %1691 = vmatpush1.msra.mxu0 %v1349
    %1692 = vmatprep.subr.mxu0 0.0
    %1693 = vmatpush1.msra.mxu0 %v1348
    %1694 = vmatprep.subr.mxu0 0.0
    %1695 = vmatpush1.msra.mxu0 %v1347
    %1696 = vmatprep.subr.mxu0 0.0
    %1697 = vmatpush1.msra.mxu0 %v1346
    %1698 = vmatprep.subr.mxu0 0.0
    %1699 = vmatpush2.msra.mxu0 0.0
    %1700 = vmatprep.subr.mxu0 0.0
    %1701 = vmatpush2.msra.mxu0 0.0
    %1702 = vmatprep.subr.mxu0 0.0
    %1703 = vmatpush2.msra.mxu0 0.0
    %1704 = vmatprep.subr.mxu0 0.0
    %1705 = vmatpush2.msra.mxu0 0.0
    %1706 = vmatprep.subr.mxu0 0.0
    %1707 = vmatpush2.msra.mxu0 0.0
    %1708 = vmatprep.subr.mxu0 0.0
    %1709 = vmatpush2.msra.mxu0 0.0
    %1710 = vmatprep.subr.mxu0 0.0
    %1711 = vmatpush2.msra.mxu0 0.0
    %1712 = vmatprep.subr.mxu0 0.0
    %1713 = vmatpush2.msra.mxu0 0.0
    %1714 = vmatprep.subr.mxu0 0.0
    %1715 = vmatpush2.msra.mxu0 0.0
    %1716 = vmatprep.subr.mxu0 0.0
    %1717 = vmatpush2.msra.mxu0 0.0
    %1718 = vmatprep.subr.mxu0 0.0
    %1719 = vmatpush2.msra.mxu0 0.0
    %1720 = vmatprep.subr.mxu0 0.0
    %1721 = vmatpush2.msra.mxu0 0.0
    %1722 = vmatprep.subr.mxu0 0.0
    %1723 = vmatpush2.msra.mxu0 0.0
    %1724 = vmatprep.subr.mxu0 0.0
    %1725 = vmatpush2.msra.mxu0 0.0
    %1726 = vmatprep.subr.mxu0 0.0
    %1727 = vmatpush2.msra.mxu0 0.0
    %1728 = vmatprep.subr.mxu0 0.0
    %1729 = vmatpush2.msra.mxu0 0.0
    %1730 = vmatprep.mubr.f32.mxu0 0.0
    %1731 = vmatmul.mubr.f32.gmra.mxu0 %v1664
    %v1732 = vpop.f32.mrf.mxu0
    %v1733 = vadd.f32 0.0, %v1732
    %v1734 = vpop.f32.mrf.mxu0
    %1735 = vdwg.mxu0
    %v1737 = vrot.slane %v1733, 2
    %v1739 = vadd.f32 %v1338, %v1737
    %v1740 = vxor.u32 %v1739, 2147483648
    %v1741 = vmul.f32 %v1740, 1.442695
    %v1742 = vpow.pop %v1741
    %v1743 = vadd.f32 %v1742, 1.0
    %v1744 = vrcp.pop %v1743
    %v1745 = vmul.f32 1.0, %v1744
    %v1746 = vtanh.pop %v1739
    %v1748 = vrot.slane %v1653, 6
    %v1750 = vmul.f32 %v1745, %v1748
    %1752 = vrot.lane.b32.xlu0 %v1746, 64
    %v1753 = vpop.permute.xlu0 %1752
    %v1755 = vmul.f32 %v1745, %v1753
    %1757 = vrot.lane.b32.xlu0 %v1755, 32
    %v1758 = vpop.permute.xlu0 %1757
    %v1760 = vadd.f32 %v1750, %v1758
    %v1761 = vtanh.pop %v1760
    %1763 = vrot.lane.b32.xlu0 %v1761, 64
    %v1764 = vpop.permute.xlu0 %1763
    %v1766 = vmul.f32 %v1745, %v1764
    %v1768 = vrot.slane %v1766, 6
    %1769 = vrot.lane.b32.xlu0 %v1768, 32
    %v1770 = vpop.permute.xlu0 %1769
    %v1771 = vsel %vm1239, %v1770, 0
    %1773 = vmatprep.subr.mxu0 0.0
    %1774 = vmatpush1.msra.mxu0 0.0
    %1775 = vmatprep.subr.mxu0 0.0
    %1776 = vmatpush1.msra.mxu0 0.0
    %1777 = vmatprep.subr.mxu0 0.0
    %1778 = vmatpush1.msra.mxu0 0.0
    %1779 = vmatprep.subr.mxu0 0.0
    %1780 = vmatpush1.msra.mxu0 0.0
    %1781 = vmatprep.subr.mxu0 0.0
    %1782 = vmatpush1.msra.mxu0 0.0
    %1783 = vmatprep.subr.mxu0 0.0
    %1784 = vmatpush1.msra.mxu0 0.0
    %1785 = vmatprep.subr.mxu0 0.0
    %1786 = vmatpush1.msra.mxu0 0.0
    %1787 = vmatprep.subr.mxu0 0.0
    %1788 = vmatpush1.msra.mxu0 0.0
    %1789 = vmatprep.subr.mxu0 0.0
    %1790 = vmatpush1.msra.mxu0 0.0
    %1791 = vmatprep.subr.mxu0 0.0
    %1792 = vmatpush1.msra.mxu0 0.0
    %1793 = vmatprep.subr.mxu0 0.0
    %1794 = vmatpush1.msra.mxu0 0.0
    %1795 = vmatprep.subr.mxu0 0.0
    %1796 = vmatpush1.msra.mxu0 0.0
    %1797 = vmatprep.subr.mxu0 0.0
    %1798 = vmatpush1.msra.mxu0 %v1349
    %1799 = vmatprep.subr.mxu0 0.0
    %1800 = vmatpush1.msra.mxu0 %v1348
    %1801 = vmatprep.subr.mxu0 0.0
    %1802 = vmatpush1.msra.mxu0 %v1347
    %1803 = vmatprep.subr.mxu0 0.0
    %1804 = vmatpush1.msra.mxu0 %v1346
    %1805 = vmatprep.subr.mxu0 0.0
    %1806 = vmatpush2.msra.mxu0 0.0
    %1807 = vmatprep.subr.mxu0 0.0
    %1808 = vmatpush2.msra.mxu0 0.0
    %1809 = vmatprep.subr.mxu0 0.0
    %1810 = vmatpush2.msra.mxu0 0.0
    %1811 = vmatprep.subr.mxu0 0.0
    %1812 = vmatpush2.msra.mxu0 0.0
    %1813 = vmatprep.subr.mxu0 0.0
    %1814 = vmatpush2.msra.mxu0 0.0
    %1815 = vmatprep.subr.mxu0 0.0
    %1816 = vmatpush2.msra.mxu0 0.0
    %1817 = vmatprep.subr.mxu0 0.0
    %1818 = vmatpush2.msra.mxu0 0.0
    %1819 = vmatprep.subr.mxu0 0.0
    %1820 = vmatpush2.msra.mxu0 0.0
    %1821 = vmatprep.subr.mxu0 0.0
    %1822 = vmatpush2.msra.mxu0 0.0
    %1823 = vmatprep.subr.mxu0 0.0
    %1824 = vmatpush2.msra.mxu0 0.0
    %1825 = vmatprep.subr.mxu0 0.0
    %1826 = vmatpush2.msra.mxu0 0.0
    %1827 = vmatprep.subr.mxu0 0.0
    %1828 = vmatpush2.msra.mxu0 0.0
    %1829 = vmatprep.subr.mxu0 0.0
    %1830 = vmatpush2.msra.mxu0 0.0
    %1831 = vmatprep.subr.mxu0 0.0
    %1832 = vmatpush2.msra.mxu0 0.0
    %1833 = vmatprep.subr.mxu0 0.0
    %1834 = vmatpush2.msra.mxu0 0.0
    %1835 = vmatprep.subr.mxu0 0.0
    %1836 = vmatpush2.msra.mxu0 0.0
    %1837 = vmatprep.mubr.f32.mxu0 0.0
    %1838 = vmatmul.mubr.f32.gmra.mxu0 %v1771
    %v1839 = vpop.f32.mrf.mxu0
    %v1840 = vadd.f32 0.0, %v1839
    %v1841 = vpop.f32.mrf.mxu0
    %1842 = vdwg.mxu0
    %v1843 = vadd.f32 %v1343, %v1840
    %v1844 = vxor.u32 %v1843, 2147483648
    %v1845 = vmul.f32 %v1844, 1.442695
    %v1846 = vpow.pop %v1845
    %v1847 = vadd.f32 %v1846, 1.0
    %v1848 = vrcp.pop %v1847
    %v1849 = vmul.f32 1.0, %v1848
    %v1850 = vtanh.pop %v1843
    %v1852 = vrot.slane %v1760, 6
    %v1854 = vmul.f32 %v1849, %v1852
    %1856 = vrot.lane.b32.xlu0 %v1850, 64
    %v1857 = vpop.permute.xlu0 %1856
    %v1859 = vmul.f32 %v1849, %v1857
    %1861 = vrot.lane.b32.xlu0 %v1859, 32
    %v1862 = vpop.permute.xlu0 %1861
    %v1864 = vadd.f32 %v1854, %v1862
    %v1865 = vtanh.pop %v1864
    %1867 = vrot.lane.b32.xlu0 %v1865, 64
    %v1868 = vpop.permute.xlu0 %1867
    %v1870 = vmul.f32 %v1849, %v1868
    %1872 = vrot.lane.b32.xlu0 %v1870, 32
    %v1873 = vpop.permute.xlu0 %1872
    %v1874 = vsel %vm1239, %v1873, 0
    %1876 = vmatprep.subr.mxu0 0.0
    %1877 = vmatpush1.msra.mxu0 0.0
    %1878 = vmatprep.subr.mxu0 0.0
    %1879 = vmatpush1.msra.mxu0 0.0
    %1880 = vmatprep.subr.mxu0 0.0
    %1881 = vmatpush1.msra.mxu0 0.0
    %1882 = vmatprep.subr.mxu0 0.0
    %1883 = vmatpush1.msra.mxu0 0.0
    %1884 = vmatprep.subr.mxu0 0.0
    %1885 = vmatpush1.msra.mxu0 0.0
    %1886 = vmatprep.subr.mxu0 0.0
    %1887 = vmatpush1.msra.mxu0 0.0
    %1888 = vmatprep.subr.mxu0 0.0
    %1889 = vmatpush1.msra.mxu0 0.0
    %1890 = vmatprep.subr.mxu0 0.0
    %1891 = vmatpush1.msra.mxu0 0.0
    %1892 = vmatprep.subr.mxu0 0.0
    %1893 = vmatpush1.msra.mxu0 0.0
    %1894 = vmatprep.subr.mxu0 0.0
    %1895 = vmatpush1.msra.mxu0 0.0
    %1896 = vmatprep.subr.mxu0 0.0
    %1897 = vmatpush1.msra.mxu0 0.0
    %1898 = vmatprep.subr.mxu0 0.0
    %1899 = vmatpush1.msra.mxu0 0.0
    %1900 = vmatprep.subr.mxu0 0.0
    %1901 = vmatpush1.msra.mxu0 %v1349
    %1902 = vmatprep.subr.mxu0 0.0
    %1903 = vmatpush1.msra.mxu0 %v1348
    %1904 = vmatprep.subr.mxu0 0.0
    %1905 = vmatpush1.msra.mxu0 %v1347
    %1906 = vmatprep.subr.mxu0 0.0
    %1907 = vmatpush1.msra.mxu0 %v1346
    %1908 = vmatprep.subr.mxu0 0.0
    %1909 = vmatpush2.msra.mxu0 0.0
    %1910 = vmatprep.subr.mxu0 0.0
    %1911 = vmatpush2.msra.mxu0 0.0
    %1912 = vmatprep.subr.mxu0 0.0
    %1913 = vmatpush2.msra.mxu0 0.0
    %1914 = vmatprep.subr.mxu0 0.0
    %1915 = vmatpush2.msra.mxu0 0.0
    %1916 = vmatprep.subr.mxu0 0.0
    %1917 = vmatpush2.msra.mxu0 0.0
    %1918 = vmatprep.subr.mxu0 0.0
    %1919 = vmatpush2.msra.mxu0 0.0
    %1920 = vmatprep.subr.mxu0 0.0
    %1921 = vmatpush2.msra.mxu0 0.0
    %1922 = vmatprep.subr.mxu0 0.0
    %1923 = vmatpush2.msra.mxu0 0.0
    %1924 = vmatprep.subr.mxu0 0.0
    %1925 = vmatpush2.msra.mxu0 0.0
    %1926 = vmatprep.subr.mxu0 0.0
    %1927 = vmatpush2.msra.mxu0 0.0
    %1928 = vmatprep.subr.mxu0 0.0
    %1929 = vmatpush2.msra.mxu0 0.0
    %1930 = vmatprep.subr.mxu0 0.0
    %1931 = vmatpush2.msra.mxu0 0.0
    %1932 = vmatprep.subr.mxu0 0.0
    %1933 = vmatpush2.msra.mxu0 0.0
    %1934 = vmatprep.subr.mxu0 0.0
    %1935 = vmatpush2.msra.mxu0 0.0
    %1936 = vmatprep.subr.mxu0 0.0
    %1937 = vmatpush2.msra.mxu0 0.0
    %1938 = vmatprep.subr.mxu0 0.0
    %1939 = vmatpush2.msra.mxu0 0.0
    %1940 = vmatprep.mubr.f32.mxu0 0.0
    %1941 = vmatmul.mubr.f32.gmra.mxu0 %v1874
    %v1942 = vpop.f32.mrf.mxu0
    %v1943 = vadd.f32 0.0, %v1942
    %v1944 = vpop.f32.mrf.mxu0
    %1945 = vdwg.mxu0
    %v1947 = vrot.slane %v1943, 6
    %v1949 = vadd.f32 %v1343, %v1947
    %v1950 = vxor.u32 %v1949, 2147483648
    %v1951 = vmul.f32 %v1950, 1.442695
    %v1952 = vpow.pop %v1951
    %v1953 = vadd.f32 %v1952, 1.0
    %v1954 = vrcp.pop %v1953
    %v1955 = vmul.f32 1.0, %v1954
    %v1956 = vtanh.pop %v1949
    %v1958 = vrot.slane %v1864, 6
    %v1960 = vmul.f32 %v1955, %v1958
    %1962 = vrot.lane.b32.xlu0 %v1956, 64
    %v1963 = vpop.permute.xlu0 %1962
    %v1965 = vmul.f32 %v1955, %v1963
    %1967 = vrot.lane.b32.xlu0 %v1965, 32
    %v1968 = vpop.permute.xlu0 %1967
    %v1970 = vadd.f32 %v1960, %v1968
    %v1971 = vtanh.pop %v1970
    %1973 = vrot.lane.b32.xlu0 %v1971, 64
    %v1974 = vpop.permute.xlu0 %1973
    %v1976 = vmul.f32 %v1955, %v1974
    %v1978 = vrot.slane %v1976, 2
    %1979 = vrot.lane.b32.xlu0 %v1978, 32
    %v1980 = vpop.permute.xlu0 %1979
    %v1981 = vsel %vm1239, %v1980, 0
    %1983 = vmatprep.subr.mxu0 0.0
    %1984 = vmatpush1.msra.mxu0 0.0
    %1985 = vmatprep.subr.mxu0 0.0
    %1986 = vmatpush1.msra.mxu0 0.0
    %1987 = vmatprep.subr.mxu0 0.0
    %1988 = vmatpush1.msra.mxu0 0.0
    %1989 = vmatprep.subr.mxu0 0.0
    %1990 = vmatpush1.msra.mxu0 0.0
    %1991 = vmatprep.subr.mxu0 0.0
    %1992 = vmatpush1.msra.mxu0 0.0
    %1993 = vmatprep.subr.mxu0 0.0
    %1994 = vmatpush1.msra.mxu0 0.0
    %1995 = vmatprep.subr.mxu0 0.0
    %1996 = vmatpush1.msra.mxu0 0.0
    %1997 = vmatprep.subr.mxu0 0.0
    %1998 = vmatpush1.msra.mxu0 0.0
    %1999 = vmatprep.subr.mxu0 0.0
    %2000 = vmatpush1.msra.mxu0 0.0
    %2001 = vmatprep.subr.mxu0 0.0
    %2002 = vmatpush1.msra.mxu0 0.0
    %2003 = vmatprep.subr.mxu0 0.0
    %2004 = vmatpush1.msra.mxu0 0.0
    %2005 = vmatprep.subr.mxu0 0.0
    %2006 = vmatpush1.msra.mxu0 0.0
    %2007 = vmatprep.subr.mxu0 0.0
    %2008 = vmatpush1.msra.mxu0 %v1349
    %2009 = vmatprep.subr.mxu0 0.0
    %2010 = vmatpush1.msra.mxu0 %v1348
    %2011 = vmatprep.subr.mxu0 0.0
    %2012 = vmatpush1.msra.mxu0 %v1347
    %2013 = vmatprep.subr.mxu0 0.0
    %2014 = vmatpush1.msra.mxu0 %v1346
    %2015 = vmatprep.subr.mxu0 0.0
    %2016 = vmatpush2.msra.mxu0 0.0
    %2017 = vmatprep.subr.mxu0 0.0
    %2018 = vmatpush2.msra.mxu0 0.0
    %2019 = vmatprep.subr.mxu0 0.0
    %2020 = vmatpush2.msra.mxu0 0.0
    %2021 = vmatprep.subr.mxu0 0.0
    %2022 = vmatpush2.msra.mxu0 0.0
    %2023 = vmatprep.subr.mxu0 0.0
    %2024 = vmatpush2.msra.mxu0 0.0
    %2025 = vmatprep.subr.mxu0 0.0
    %2026 = vmatpush2.msra.mxu0 0.0
    %2027 = vmatprep.subr.mxu0 0.0
    %2028 = vmatpush2.msra.mxu0 0.0
    %2029 = vmatprep.subr.mxu0 0.0
    %2030 = vmatpush2.msra.mxu0 0.0
    %2031 = vmatprep.subr.mxu0 0.0
    %2032 = vmatpush2.msra.mxu0 0.0
    %2033 = vmatprep.subr.mxu0 0.0
    %2034 = vmatpush2.msra.mxu0 0.0
    %2035 = vmatprep.subr.mxu0 0.0
    %2036 = vmatpush2.msra.mxu0 0.0
    %2037 = vmatprep.subr.mxu0 0.0
    %2038 = vmatpush2.msra.mxu0 0.0
    %2039 = vmatprep.subr.mxu0 0.0
    %2040 = vmatpush2.msra.mxu0 0.0
    %2041 = vmatprep.subr.mxu0 0.0
    %2042 = vmatpush2.msra.mxu0 0.0
    %2043 = vmatprep.subr.mxu0 0.0
    %2044 = vmatpush2.msra.mxu0 0.0
    %2045 = vmatprep.subr.mxu0 0.0
    %2046 = vmatpush2.msra.mxu0 0.0
    %2047 = vmatprep.mubr.f32.mxu0 0.0
    %2048 = vmatmul.mubr.f32.gmra.mxu0 %v1981
    %v2049 = vpop.f32.mrf.mxu0
    %v2050 = vadd.f32 0.0, %v2049
    %v2051 = vpop.f32.mrf.mxu0
    %2052 = vdwg.mxu0
    %v2054 = vrot.slane %v2050, 4
    %v2056 = vadd.f32 %v1343, %v2054
    %v2057 = vxor.u32 %v2056, 2147483648
    %v2058 = vmul.f32 %v2057, 1.442695
    %v2059 = vpow.pop %v2058
    %v2060 = vadd.f32 %v2059, 1.0
    %v2061 = vrcp.pop %v2060
    %v2062 = vmul.f32 1.0, %v2061
    %v2063 = vtanh.pop %v2056
    %v2065 = vrot.slane %v1970, 6
    %v2067 = vmul.f32 %v2062, %v2065
    %2069 = vrot.lane.b32.xlu0 %v2063, 64
    %v2070 = vpop.permute.xlu0 %2069
    %v2072 = vmul.f32 %v2062, %v2070
    %2074 = vrot.lane.b32.xlu0 %v2072, 32
    %v2075 = vpop.permute.xlu0 %2074
    %v2077 = vadd.f32 %v2067, %v2075
    %v2078 = vtanh.pop %v2077
    %2080 = vrot.lane.b32.xlu0 %v2078, 64
    %v2081 = vpop.permute.xlu0 %2080
    %v2083 = vmul.f32 %v2062, %v2081
    %v2085 = vrot.slane %v2083, 4
    %2086 = vrot.lane.b32.xlu0 %v2085, 32
    %v2087 = vpop.permute.xlu0 %2086
    %v2088 = vsel %vm1239, %v2087, 0
    %2090 = vmatprep.subr.mxu0 0.0
    %2091 = vmatpush1.msra.mxu0 0.0
    %2092 = vmatprep.subr.mxu0 0.0
    %2093 = vmatpush1.msra.mxu0 0.0
    %2094 = vmatprep.subr.mxu0 0.0
    %2095 = vmatpush1.msra.mxu0 0.0
    %2096 = vmatprep.subr.mxu0 0.0
    %2097 = vmatpush1.msra.mxu0 0.0
    %2098 = vmatprep.subr.mxu0 0.0
    %2099 = vmatpush1.msra.mxu0 0.0
    %2100 = vmatprep.subr.mxu0 0.0
    %2101 = vmatpush1.msra.mxu0 0.0
    %2102 = vmatprep.subr.mxu0 0.0
    %2103 = vmatpush1.msra.mxu0 0.0
    %2104 = vmatprep.subr.mxu0 0.0
    %2105 = vmatpush1.msra.mxu0 0.0
    %2106 = vmatprep.subr.mxu0 0.0
    %2107 = vmatpush1.msra.mxu0 0.0
    %2108 = vmatprep.subr.mxu0 0.0
    %2109 = vmatpush1.msra.mxu0 0.0
    %2110 = vmatprep.subr.mxu0 0.0
    %2111 = vmatpush1.msra.mxu0 0.0
    %2112 = vmatprep.subr.mxu0 0.0
    %2113 = vmatpush1.msra.mxu0 0.0
    %2114 = vmatprep.subr.mxu0 0.0
    %2115 = vmatpush1.msra.mxu0 %v1349
    %2116 = vmatprep.subr.mxu0 0.0
    %2117 = vmatpush1.msra.mxu0 %v1348
    %2118 = vmatprep.subr.mxu0 0.0
    %2119 = vmatpush1.msra.mxu0 %v1347
    %2120 = vmatprep.subr.mxu0 0.0
    %2121 = vmatpush1.msra.mxu0 %v1346
    %2122 = vmatprep.subr.mxu0 0.0
    %2123 = vmatpush2.msra.mxu0 0.0
    %2124 = vmatprep.subr.mxu0 0.0
    %2125 = vmatpush2.msra.mxu0 0.0
    %2126 = vmatprep.subr.mxu0 0.0
    %2127 = vmatpush2.msra.mxu0 0.0
    %2128 = vmatprep.subr.mxu0 0.0
    %2129 = vmatpush2.msra.mxu0 0.0
    %2130 = vmatprep.subr.mxu0 0.0
    %2131 = vmatpush2.msra.mxu0 0.0
    %2132 = vmatprep.subr.mxu0 0.0
    %2133 = vmatpush2.msra.mxu0 0.0
    %2134 = vmatprep.subr.mxu0 0.0
    %2135 = vmatpush2.msra.mxu0 0.0
    %2136 = vmatprep.subr.mxu0 0.0
    %2137 = vmatpush2.msra.mxu0 0.0
    %2138 = vmatprep.subr.mxu0 0.0
    %2139 = vmatpush2.msra.mxu0 0.0
    %2140 = vmatprep.subr.mxu0 0.0
    %2141 = vmatpush2.msra.mxu0 0.0
    %2142 = vmatprep.subr.mxu0 0.0
    %2143 = vmatpush2.msra.mxu0 0.0
    %2144 = vmatprep.subr.mxu0 0.0
    %2145 = vmatpush2.msra.mxu0 0.0
    %2146 = vmatprep.subr.mxu0 0.0
    %2147 = vmatpush2.msra.mxu0 0.0
    %2148 = vmatprep.subr.mxu0 0.0
    %2149 = vmatpush2.msra.mxu0 0.0
    %2150 = vmatprep.subr.mxu0 0.0
    %2151 = vmatpush2.msra.mxu0 0.0
    %2152 = vmatprep.subr.mxu0 0.0
    %2153 = vmatpush2.msra.mxu0 0.0
    %2154 = vmatprep.mubr.f32.mxu0 0.0
    %2155 = vmatmul.mubr.f32.gmra.mxu0 %v2088
    %v2156 = vpop.f32.mrf.mxu0
    %v2157 = vadd.f32 0.0, %v2156
    %v2158 = vpop.f32.mrf.mxu0
    %2159 = vdwg.mxu0
    %v2161 = vrot.slane %v2157, 2
    %v2163 = vadd.f32 %v1343, %v2161
    %v2164 = vxor.u32 %v2163, 2147483648
    %v2165 = vmul.f32 %v2164, 1.442695
    %v2166 = vpow.pop %v2165
    %v2167 = vadd.f32 %v2166, 1.0
    %v2168 = vrcp.pop %v2167
    %v2169 = vmul.f32 1.0, %v2168
    %v2170 = vtanh.pop %v2163
    %v2172 = vrot.slane %v2077, 6
    %v2174 = vmul.f32 %v2169, %v2172
    %2176 = vrot.lane.b32.xlu0 %v2170, 64
    %v2177 = vpop.permute.xlu0 %2176
    %v2179 = vmul.f32 %v2169, %v2177
    %2181 = vrot.lane.b32.xlu0 %v2179, 32
    %v2182 = vpop.permute.xlu0 %2181
    %v2184 = vadd.f32 %v2174, %v2182
    %v2185 = vtanh.pop %v2184
    %2187 = vrot.lane.b32.xlu0 %v2185, 64
    %v2188 = vpop.permute.xlu0 %2187
    %v2190 = vmul.f32 %v2169, %v2188
    %v2191 = vld [vmem:[%s8] sm:$0xff]
    %v2192 = vld [vmem:[%s8 + $0x8] sm:$0xff]
    %v2193 = vld [vmem:[%s8 + $0x10] sm:$0xff]
    %v2194 = vld [vmem:[%s8 + $0x18] sm:$0xff]
    %v2195 = vld [vmem:[%s8 + $0x20] sm:$0xff]
    %v2196 = vld [vmem:[%s8 + $0x28] sm:$0xff]
    %v2197 = vld [vmem:[%s8 + $0x30] sm:$0xff]
    %v2198 = vld [vmem:[%s8 + $0x38] sm:$0xff]
    %v2199 = vld [vmem:[%s8 + $0x40] sm:$0xff]
    %v2200 = vld [vmem:[%s8 + $0x48] sm:$0xff]
    %v2201 = vld [vmem:[%s8 + $0x50] sm:$0xff]
    %v2202 = vld [vmem:[%s8 + $0x58] sm:$0xff]
    %v2203 = vld [vmem:[%s8 + $0x60] sm:$0xff]
    %v2204 = vld [vmem:[%s8 + $0x68] sm:$0xff]
    %v2205 = vld [vmem:[%s8 + $0x70] sm:$0xff]
    %v2206 = vld [vmem:[%s8 + $0x78] sm:$0xff]
    %v2207 = vld [vmem:[%s9] sm:$0x1]
    %v2209 = vlaneseq
    %v2210 = vshrl.u32 %v2209, 7
    %v2211 = vsub.s32 0, %v2210
    %v2212 = vrot.slane %v2207, %v2211
    %v2215 = vrot.slane %v1247, 6
    %2217 = vmatprep.subr.mxu0 0.0
    %2218 = vmatpush1.msra.mxu0 %v2206
    %2219 = vmatprep.subr.mxu0 0.0
    %2220 = vmatpush1.msra.mxu0 %v2205
    %2221 = vmatprep.subr.mxu0 0.0
    %2222 = vmatpush1.msra.mxu0 %v2204
    %2223 = vmatprep.subr.mxu0 0.0
    %2224 = vmatpush1.msra.mxu0 %v2203
    %2225 = vmatprep.subr.mxu0 0.0
    %2226 = vmatpush1.msra.mxu0 %v2202
    %2227 = vmatprep.subr.mxu0 0.0
    %2228 = vmatpush1.msra.mxu0 %v2201
    %2229 = vmatprep.subr.mxu0 0.0
    %2230 = vmatpush1.msra.mxu0 %v2200
    %2231 = vmatprep.subr.mxu0 0.0
    %2232 = vmatpush1.msra.mxu0 %v2199
    %2233 = vmatprep.subr.mxu0 0.0
    %2234 = vmatpush1.msra.mxu0 %v2198
    %2235 = vmatprep.subr.mxu0 0.0
    %2236 = vmatpush1.msra.mxu0 %v2197
    %2237 = vmatprep.subr.mxu0 0.0
    %2238 = vmatpush1.msra.mxu0 %v2196
    %2239 = vmatprep.subr.mxu0 0.0
    %2240 = vmatpush1.msra.mxu0 %v2195
    %2241 = vmatprep.subr.mxu0 0.0
    %2242 = vmatpush1.msra.mxu0 %v2194
    %2243 = vmatprep.subr.mxu0 0.0
    %2244 = vmatpush1.msra.mxu0 %v2193
    %2245 = vmatprep.subr.mxu0 0.0
    %2246 = vmatpush1.msra.mxu0 %v2192
    %2247 = vmatprep.subr.mxu0 0.0
    %2248 = vmatpush1.msra.mxu0 %v2191
    %2249 = vmatprep.subr.mxu0 0.0
    %2250 = vmatpush2.msra.mxu0 0.0
    %2251 = vmatprep.subr.mxu0 0.0
    %2252 = vmatpush2.msra.mxu0 0.0
    %2253 = vmatprep.subr.mxu0 0.0
    %2254 = vmatpush2.msra.mxu0 0.0
    %2255 = vmatprep.subr.mxu0 0.0
    %2256 = vmatpush2.msra.mxu0 0.0
    %2257 = vmatprep.subr.mxu0 0.0
    %2258 = vmatpush2.msra.mxu0 0.0
    %2259 = vmatprep.subr.mxu0 0.0
    %2260 = vmatpush2.msra.mxu0 0.0
    %2261 = vmatprep.subr.mxu0 0.0
    %2262 = vmatpush2.msra.mxu0 0.0
    %2263 = vmatprep.subr.mxu0 0.0
    %2264 = vmatpush2.msra.mxu0 0.0
    %2265 = vmatprep.subr.mxu0 0.0
    %2266 = vmatpush2.msra.mxu0 0.0
    %2267 = vmatprep.subr.mxu0 0.0
    %2268 = vmatpush2.msra.mxu0 0.0
    %2269 = vmatprep.subr.mxu0 0.0
    %2270 = vmatpush2.msra.mxu0 0.0
    %2271 = vmatprep.subr.mxu0 0.0
    %2272 = vmatpush2.msra.mxu0 0.0
    %2273 = vmatprep.subr.mxu0 0.0
    %2274 = vmatpush2.msra.mxu0 0.0
    %2275 = vmatprep.subr.mxu0 0.0
    %2276 = vmatpush2.msra.mxu0 0.0
    %2277 = vmatprep.subr.mxu0 0.0
    %2278 = vmatpush2.msra.mxu0 0.0
    %2279 = vmatprep.subr.mxu0 0.0
    %2280 = vmatpush2.msra.mxu0 0.0
    %2281 = vmatprep.mubr.f32.mxu0 0.0
    %2282 = vmatmul.mubr.f32.gmra.mxu0 %v2215
    %v2283 = vpop.f32.mrf.mxu0
    %v2284 = vadd.f32 %v2212, %v2283
    %v2285 = vpop.f32.mrf.mxu0
    %2286 = vdwg.mxu0
    %v2287 = vxor.u32 %v2284, 2147483648
    %v2288 = vmul.f32 %v2287, 1.442695
    %v2289 = vpow.pop %v2288
    %v2290 = vadd.f32 %v2289, 1.0
    %v2291 = vrcp.pop %v2290
    %v2292 = vmul.f32 1.0, %v2291
    %v2293 = vtanh.pop %v2284
    %2295 = vrot.lane.b32.xlu0 %v2293, 64
    %v2296 = vpop.permute.xlu0 %2295
    %v2298 = vmul.f32 %v2292, %v2296
    %v2299 = vtanh.pop %v2298
    %2301 = vrot.lane.b32.xlu0 %v2299, 96
    %v2302 = vpop.permute.xlu0 %2301
    %v2304 = vmul.f32 %v2292, %v2302
    %2306 = vrot.lane.b32.xlu0 %v2190, 32
    %v2307 = vpop.permute.xlu0 %2306
    %v2310 = vrot.slane %v2304, 2
    %2311 = vrot.lane.b32.xlu0 %v2310, 64
    %v2312 = vpop.permute.xlu0 %2311
    %v2314 = vsel %vm1239, %v2307, %v2312
    %v2315 = vld [vmem:[%s10] sm:$0xff]
    %v2316 = vld [vmem:[%s10 + $0x8] sm:$0xff]
    %v2317 = vld [vmem:[%s10 + $0x10] sm:$0xff]
    %v2318 = vld [vmem:[%s10 + $0x18] sm:$0xff]
    %v2319 = vld [vmem:[%s10 + $0x20] sm:$0xff]
    %v2320 = vld [vmem:[%s10 + $0x28] sm:$0xff]
    %v2321 = vld [vmem:[%s10 + $0x30] sm:$0xff]
    %v2322 = vld [vmem:[%s10 + $0x38] sm:$0xff]
    %v2323 = vld [vmem:[%s11] sm:$0x1]
    %v2325 = vlaneseq
    %v2326 = vshrl.u32 %v2325, 7
    %v2327 = vsub.s32 0, %v2326
    %v2328 = vrot.slane %v2323, %v2327
    %v2331 = vrot.slane %v2314, 6
    %v2332 = vsel %vm1242, %v2331, 0
    %2334 = vmatprep.subr.mxu0 0.0
    %2335 = vmatpush1.msra.mxu0 0.0
    %2336 = vmatprep.subr.mxu0 0.0
    %2337 = vmatpush1.msra.mxu0 0.0
    %2338 = vmatprep.subr.mxu0 0.0
    %2339 = vmatpush1.msra.mxu0 0.0
    %2340 = vmatprep.subr.mxu0 0.0
    %2341 = vmatpush1.msra.mxu0 0.0
    %2342 = vmatprep.subr.mxu0 0.0
    %2343 = vmatpush1.msra.mxu0 0.0
    %2344 = vmatprep.subr.mxu0 0.0
    %2345 = vmatpush1.msra.mxu0 0.0
    %2346 = vmatprep.subr.mxu0 0.0
    %2347 = vmatpush1.msra.mxu0 0.0
    %2348 = vmatprep.subr.mxu0 0.0
    %2349 = vmatpush1.msra.mxu0 0.0
    %2350 = vmatprep.subr.mxu0 0.0
    %2351 = vmatpush1.msra.mxu0 %v2322
    %2352 = vmatprep.subr.mxu0 0.0
    %2353 = vmatpush1.msra.mxu0 %v2321
    %2354 = vmatprep.subr.mxu0 0.0
    %2355 = vmatpush1.msra.mxu0 %v2320
    %2356 = vmatprep.subr.mxu0 0.0
    %2357 = vmatpush1.msra.mxu0 %v2319
    %2358 = vmatprep.subr.mxu0 0.0
    %2359 = vmatpush1.msra.mxu0 %v2318
    %2360 = vmatprep.subr.mxu0 0.0
    %2361 = vmatpush1.msra.mxu0 %v2317
    %2362 = vmatprep.subr.mxu0 0.0
    %2363 = vmatpush1.msra.mxu0 %v2316
    %2364 = vmatprep.subr.mxu0 0.0
    %2365 = vmatpush1.msra.mxu0 %v2315
    %2366 = vmatprep.subr.mxu0 0.0
    %2367 = vmatpush2.msra.mxu0 0.0
    %2368 = vmatprep.subr.mxu0 0.0
    %2369 = vmatpush2.msra.mxu0 0.0
    %2370 = vmatprep.subr.mxu0 0.0
    %2371 = vmatpush2.msra.mxu0 0.0
    %2372 = vmatprep.subr.mxu0 0.0
    %2373 = vmatpush2.msra.mxu0 0.0
    %2374 = vmatprep.subr.mxu0 0.0
    %2375 = vmatpush2.msra.mxu0 0.0
    %2376 = vmatprep.subr.mxu0 0.0
    %2377 = vmatpush2.msra.mxu0 0.0
    %2378 = vmatprep.subr.mxu0 0.0
    %2379 = vmatpush2.msra.mxu0 0.0
    %2380 = vmatprep.subr.mxu0 0.0
    %2381 = vmatpush2.msra.mxu0 0.0
    %2382 = vmatprep.subr.mxu0 0.0
    %2383 = vmatpush2.msra.mxu0 0.0
    %2384 = vmatprep.subr.mxu0 0.0
    %2385 = vmatpush2.msra.mxu0 0.0
    %2386 = vmatprep.subr.mxu0 0.0
    %2387 = vmatpush2.msra.mxu0 0.0
    %2388 = vmatprep.subr.mxu0 0.0
    %2389 = vmatpush2.msra.mxu0 0.0
    %2390 = vmatprep.subr.mxu0 0.0
    %2391 = vmatpush2.msra.mxu0 0.0
    %2392 = vmatprep.subr.mxu0 0.0
    %2393 = vmatpush2.msra.mxu0 0.0
    %2394 = vmatprep.subr.mxu0 0.0
    %2395 = vmatpush2.msra.mxu0 0.0
    %2396 = vmatprep.subr.mxu0 0.0
    %2397 = vmatpush2.msra.mxu0 0.0
    %2398 = vmatprep.mubr.f32.mxu0 0.0
    %2399 = vmatmul.mubr.f32.gmra.mxu0 %v2332
    %v2400 = vpop.f32.mrf.mxu0
    %v2401 = vadd.f32 %v2328, %v2400
    %v2402 = vpop.f32.mrf.mxu0
    %2403 = vdwg.mxu0
    %v2404 = vmax.f32 %v2401, 0.0
    %v2405 = vld [vmem:[%s12] sm:$0xff]
    %v2406 = vld [vmem:[%s12 + $0x8] sm:$0xff]
    %v2407 = vld [vmem:[%s12 + $0x10] sm:$0xff]
    %v2408 = vld [vmem:[%s12 + $0x18] sm:$0xff]
    %v2409 = vld [vmem:[%s12 + $0x20] sm:$0xff]
    %v2410 = vld [vmem:[%s12 + $0x28] sm:$0xff]
    %v2411 = vld [vmem:[%s12 + $0x30] sm:$0xff]
    %v2412 = vld [vmem:[%s12 + $0x38] sm:$0xff]
    %v2413 = vld [vmem:[%s13] sm:$0x1]
    %v2415 = vlaneseq
    %v2416 = vshrl.u32 %v2415, 7
    %v2417 = vsub.s32 0, %v2416
    %v2418 = vrot.slane %v2413, %v2417
    %v2421 = vsel %vm1242, %v2404, 0
    %2423 = vmatprep.subr.mxu0 0.0
    %2424 = vmatpush1.msra.mxu0 0.0
    %2425 = vmatprep.subr.mxu0 0.0
    %2426 = vmatpush1.msra.mxu0 0.0
    %2427 = vmatprep.subr.mxu0 0.0
    %2428 = vmatpush1.msra.mxu0 0.0
    %2429 = vmatprep.subr.mxu0 0.0
    %2430 = vmatpush1.msra.mxu0 0.0
    %2431 = vmatprep.subr.mxu0 0.0
    %2432 = vmatpush1.msra.mxu0 0.0
    %2433 = vmatprep.subr.mxu0 0.0
    %2434 = vmatpush1.msra.mxu0 0.0
    %2435 = vmatprep.subr.mxu0 0.0
    %2436 = vmatpush1.msra.mxu0 0.0
    %2437 = vmatprep.subr.mxu0 0.0
    %2438 = vmatpush1.msra.mxu0 0.0
    %2439 = vmatprep.subr.mxu0 0.0
    %2440 = vmatpush1.msra.mxu0 %v2412
    %2441 = vmatprep.subr.mxu0 0.0
    %2442 = vmatpush1.msra.mxu0 %v2411
    %2443 = vmatprep.subr.mxu0 0.0
    %2444 = vmatpush1.msra.mxu0 %v2410
    %2445 = vmatprep.subr.mxu0 0.0
    %2446 = vmatpush1.msra.mxu0 %v2409
    %2447 = vmatprep.subr.mxu0 0.0
    %2448 = vmatpush1.msra.mxu0 %v2408
    %2449 = vmatprep.subr.mxu0 0.0
    %2450 = vmatpush1.msra.mxu0 %v2407
    %2451 = vmatprep.subr.mxu0 0.0
    %2452 = vmatpush1.msra.mxu0 %v2406
    %2453 = vmatprep.subr.mxu0 0.0
    %2454 = vmatpush1.msra.mxu0 %v2405
    %2455 = vmatprep.subr.mxu0 0.0
    %2456 = vmatpush2.msra.mxu0 0.0
    %2457 = vmatprep.subr.mxu0 0.0
    %2458 = vmatpush2.msra.mxu0 0.0
    %2459 = vmatprep.subr.mxu0 0.0
    %2460 = vmatpush2.msra.mxu0 0.0
    %2461 = vmatprep.subr.mxu0 0.0
    %2462 = vmatpush2.msra.mxu0 0.0
    %2463 = vmatprep.subr.mxu0 0.0
    %2464 = vmatpush2.msra.mxu0 0.0
    %2465 = vmatprep.subr.mxu0 0.0
    %2466 = vmatpush2.msra.mxu0 0.0
    %2467 = vmatprep.subr.mxu0 0.0
    %2468 = vmatpush2.msra.mxu0 0.0
    %2469 = vmatprep.subr.mxu0 0.0
    %2470 = vmatpush2.msra.mxu0 0.0
    %2471 = vmatprep.subr.mxu0 0.0
    %2472 = vmatpush2.msra.mxu0 0.0
    %2473 = vmatprep.subr.mxu0 0.0
    %2474 = vmatpush2.msra.mxu0 0.0
    %2475 = vmatprep.subr.mxu0 0.0
    %2476 = vmatpush2.msra.mxu0 0.0
    %2477 = vmatprep.subr.mxu0 0.0
    %2478 = vmatpush2.msra.mxu0 0.0
    %2479 = vmatprep.subr.mxu0 0.0
    %2480 = vmatpush2.msra.mxu0 0.0
    %2481 = vmatprep.subr.mxu0 0.0
    %2482 = vmatpush2.msra.mxu0 0.0
    %2483 = vmatprep.subr.mxu0 0.0
    %2484 = vmatpush2.msra.mxu0 0.0
    %2485 = vmatprep.subr.mxu0 0.0
    %2486 = vmatpush2.msra.mxu0 0.0
    %2487 = vmatprep.mubr.f32.mxu0 0.0
    %2488 = vmatmul.mubr.f32.gmra.mxu0 %v2421
    %v2489 = vpop.f32.mrf.mxu0
    %v2490 = vadd.f32 %v2418, %v2489
    %v2491 = vpop.f32.mrf.mxu0
    %2492 = vdwg.mxu0
    %vm2493 = vcmask 9216
    %2494 = vst.msk [vmem:[#allocation2] sm:$0x3] %vm2493, %v2490
    // Predicated region
    $region58: #{cnn_lstm_forward.1} parent=1 // pred_check
      _
    $region59: #{cnn_lstm_forward.1} parent=1 // pred_check_branch
      %2496 = sbr.rel (0) target = $region61
    $region60: #{cnn_lstm_forward.1} parent=1 // pred_region
      %s2498 = ssub.s32 32, 32
      %2499 = vsyncadd [#allocation3], %s2498
      %s2501 = sshll.u32 [#allocation2], 4
      %s2502 = int_to_ptr.vmem [resolvable:$true] %s2501
      %2504 = dma.vmem_to_hbm [thread:$0]  %s2502, 32, %s14, [#allocation3]
    $region61: #{cnn_lstm_forward.1} parent=1 // pred_fallthru
      _
    // Predicated region
    $region62: #{cnn_lstm_forward.1} parent=1 // pred_check
      _
    $region63: #{cnn_lstm_forward.1} parent=1 // pred_check_branch
      %2506 = sbr.rel (0) target = $region65
    $region64: #{cnn_lstm_forward.1} parent=1 // pred_region
      %2507 = dma.done [#allocation3], 32
    $region65: #{cnn_lstm_forward.1} parent=1 // pred_fallthru
      _
    %2508 = vsyncpa [#allocation3], 1

</llo_original>
